<compile_context>
chip_gen: v7x
topology: tpu7x:2x2x1
jax: 0.10.0
libtpu: 0.0.40
codegen_flags: <defaults>
</compile_context>

<pallas_src>
import math

import jax
import jax.numpy as jnp
from jax import lax
from jax.experimental import pallas as pl
from jax.experimental.pallas import tpu as pltpu


def _make_nl_kernel(tq, mxu_dtype):
    f32 = jnp.float32

    def kernel(x_ref, wt_ref, bt_ref, wp_ref, bp_ref, wg_ref, bg_ref,
               wz_ref, bz_ref, o_ref):
        # x_ref : (1, C, S)   one batch element, channels on sublanes, S on lanes
        # wt/wp/wg : (Ci, C), biases (Ci, 1); wz : (C, Ci), bz : (C, 1) (BN folded)
        # o_ref : (1, C, TQ)  query tile of the output
        q0 = pl.multiple_of(pl.program_id(1) * tq, tq)

        x_kv = x_ref[0]                                   # (C, S)   keys/values
        x_q = x_ref[0, :, pl.ds(q0, tq)]                  # (C, TQ)  query slice (VMEM, no extra DMA)

        xk = x_kv.astype(mxu_dtype)
        xq = x_q.astype(mxu_dtype)

        # 1x1-conv projections as plain matmuls; S stays on lanes.
        theta = (jnp.dot(wt_ref[...].astype(mxu_dtype), xq,
                         preferred_element_type=f32) + bt_ref[...])       # (Ci, TQ)
        phi = (jnp.dot(wp_ref[...].astype(mxu_dtype), xk,
                       preferred_element_type=f32) + bp_ref[...])         # (Ci, S)
        g = (jnp.dot(wg_ref[...].astype(mxu_dtype), xk,
                     preferred_element_type=f32) + bg_ref[...])           # (Ci, S)

        # Affinity f[q, t] = <theta[:, q], phi[:, t]> : contract the Ci sublane
        # axis (trans_a MXU matmul) -- no materialized transpose.
        f = lax.dot_general(theta.astype(mxu_dtype), phi.astype(mxu_dtype),
                            (((0,), (0,)), ((), ())),
                            preferred_element_type=f32)                   # (TQ, S)

        # Row softmax over keys ('embedded' mode); statistics stay in f32.
        m = jnp.max(f, axis=-1, keepdims=True)                            # (TQ, 1)
        e = jnp.exp(f - m)                                                # (TQ, S)
        e_mx = e.astype(mxu_dtype)

        # Un-normalized aggregation y[i, q] = sum_t g[i, t] * e[q, t]
        # (contract the key/lane axis of both operands; result already (Ci, TQ)).
        y = lax.dot_general(g.astype(mxu_dtype), e_mx,
                            (((1,), (1,)), ((), ())),
                            preferred_element_type=f32)                   # (Ci, TQ)

        # Softmax denominator directly in the lane-dense (1, TQ) orientation
        # via a tiny ones-row matmul (instead of a (TQ,1)->(1,TQ) transpose).
        ones_row = jnp.ones((1, e_mx.shape[-1]), mxu_dtype)
        l_row = lax.dot_general(ones_row, e_mx,
                                (((1,), (1,)), ((), ())),
                                preferred_element_type=f32)               # (1, TQ)

        # W_z (1x1 conv with BN folded), deferred softmax normalization, bias,
        # residual add.
        wy = jnp.dot(wz_ref[...].astype(mxu_dtype), y.astype(mxu_dtype),
                     preferred_element_type=f32)                          # (C, TQ)
        inv_l = pl.reciprocal(l_row, approx=False)                        # exact 1/l
        z = wy * inv_l + bz_ref[...] + x_q.astype(f32)
        o_ref[0] = z.astype(o_ref.dtype)

    return kernel


def _pick_q_tile(S, max_q_tile):
    """Largest lane-aligned query tile: either S itself or a divisor of S that
    is a multiple of 128 (keeps output blocks lane-dense and BlockSpec-legal)."""
    if S <= max_q_tile:
        return S
    for tq in range(max_q_tile, 127, -1):
        if S % tq == 0 and tq % 128 == 0:
            return tq
    return S  # no aligned divisor: fall back to a single query tile


def nl_block_nd(x, params, *, mxu_dtype=jnp.bfloat16, max_q_tile=512,
                ci_multiple=128):
    """Non-local block forward, mode='embedded', bn_layer=True (inference BN).

    x: (N, C, *spatial)  (dimension 1/2/3 all supported via flattening).
    mxu_dtype: operand dtype fed to the MXU (bf16 = fast path; f32 = exact).
    """
    N, C = x.shape[0], x.shape[1]
    S = math.prod(x.shape[2:])
    Ci = params["w_theta"].shape[0]

    # Fold inference-mode BatchNorm into the W_z 1x1 conv (per-channel affine).
    eps = params["bn_eps"]
    scale = params["bn_gamma"] / jnp.sqrt(params["bn_var"] + eps)          # (C,)
    wz_eff = params["w_z"] * scale[:, None]                                # (C, Ci)
    bz_eff = (params["b_z"] - params["bn_mean"]) * scale + params["bn_beta"]

    # Zero-pad the inter-channel (contraction) dim: exact, and recovers MXU
    # occupancy on the affinity/aggregation contractions when Ci is small.
    if ci_multiple and ci_multiple > 1:
        ci_pad = ((Ci + ci_multiple - 1) // ci_multiple) * ci_multiple
    else:
        ci_pad = Ci
    dp = ci_pad - Ci

    def pad_proj(w, b):
        return jnp.pad(w, ((0, dp), (0, 0))), jnp.pad(b, (0, dp))

    wt, bt = pad_proj(params["w_theta"], params["b_theta"])
    wp, bp = pad_proj(params["w_phi"], params["b_phi"])
    wg, bg = pad_proj(params["w_g"], params["b_g"])
    wz = jnp.pad(wz_eff, ((0, 0), (0, dp)))                                # (C, Ci_pad)

    bt = bt.reshape(ci_pad, 1)
    bp = bp.reshape(ci_pad, 1)
    bg = bg.reshape(ci_pad, 1)
    bz = bz_eff.reshape(C, 1)

    x_flat = x.reshape(N, C, S)

    tq = _pick_q_tile(S, max_q_tile)
    grid = (N, S // tq)

    def wspec(shape):
        return pl.BlockSpec(shape, lambda b, q: (0, 0))   # weights stay resident

    out = pl.pallas_call(
        _make_nl_kernel(tq, mxu_dtype),
        out_shape=jax.ShapeDtypeStruct((N, C, S), x.dtype),
        grid=grid,
        in_specs=[
            pl.BlockSpec((1, C, S), lambda b, q: (b, 0, 0)),   # x (keys + queries)
            wspec((ci_pad, C)), wspec((ci_pad, 1)),            # theta
            wspec((ci_pad, C)), wspec((ci_pad, 1)),            # phi
            wspec((ci_pad, C)), wspec((ci_pad, 1)),            # g
            wspec((C, ci_pad)), wspec((C, 1)),                 # W_z (BN folded)
        ],
        out_specs=pl.BlockSpec((1, C, tq), lambda b, q: (b, 0, q)),
        compiler_params=pltpu.CompilerParams(
            dimension_semantics=("parallel", "parallel")),
    )(x_flat, wt, bt, wp, bp, wg, bg, wz, bz)

    return out.reshape(x.shape)


def nl_block_ref(x, params):
    """Pure-JAX reference of the same forward (embedded mode, folded BN)."""
    N, C = x.shape[0], x.shape[1]
    S = math.prod(x.shape[2:])
    eps = params["bn_eps"]
    scale = params["bn_gamma"] / jnp.sqrt(params["bn_var"] + eps)
    wz_eff = params["w_z"] * scale[:, None]
    bz_eff = (params["b_z"] - params["bn_mean"]) * scale + params["bn_beta"]

    xf = x.reshape(N, C, S).astype(jnp.float32)
    theta = jnp.einsum("ic,ncs->nis", params["w_theta"], xf) + params["b_theta"][None, :, None]
    phi = jnp.einsum("ic,ncs->nis", params["w_phi"], xf) + params["b_phi"][None, :, None]
    g = jnp.einsum("ic,ncs->nis", params["w_g"], xf) + params["b_g"][None, :, None]
    f = jnp.einsum("nis,nit->nst", theta, phi)                 # (N, S, S)
    m = jnp.max(f, axis=-1, keepdims=True)
    e = jnp.exp(f - m)
    p = e / jnp.sum(e, axis=-1, keepdims=True)
    y = jnp.einsum("nst,nit->nis", p, g)                       # (N, Ci, S)
    wy = jnp.einsum("ci,nis->ncs", wz_eff, y) + bz_eff[None, :, None]
    z = wy + xf
    return z.reshape(x.shape).astype(x.dtype)


if __name__ == "__main__":
    key = jax.random.PRNGKey(0)
    N, C = 2, 4
    T, H, W = 2, 8, 8                    # S = T*H*W = 128 (lane-dense)
    Ci = C // 2

    ks = jax.random.split(key, 13)
    x = jax.random.normal(ks[0], (N, C, T, H, W), dtype=jnp.float32)

    params = dict(
        w_theta=0.2 * jax.random.normal(ks[1], (Ci, C), dtype=jnp.float32),
        b_theta=0.1 * jax.random.normal(ks[2], (Ci,), dtype=jnp.float32),
        w_phi=0.2 * jax.random.normal(ks[3], (Ci, C), dtype=jnp.float32),
        b_phi=0.1 * jax.random.normal(ks[4], (Ci,), dtype=jnp.float32),
        w_g=0.2 * jax.random.normal(ks[5], (Ci, C), dtype=jnp.float32),
        b_g=0.1 * jax.random.normal(ks[6], (Ci,), dtype=jnp.float32),
        w_z=0.2 * jax.random.normal(ks[7], (C, Ci), dtype=jnp.float32),
        b_z=0.1 * jax.random.normal(ks[8], (C,), dtype=jnp.float32),
        # PyTorch init sets BN gamma/beta to 0 (so z == x); use non-trivial BN
        # parameters here so the test exercises the whole path.
        bn_gamma=1.0 + 0.1 * jax.random.normal(ks[9], (C,), dtype=jnp.float32),
        bn_beta=0.1 * jax.random.normal(ks[10], (C,), dtype=jnp.float32),
        bn_mean=0.1 * jax.random.normal(ks[11], (C,), dtype=jnp.float32),
        bn_var=jnp.abs(1.0 + 0.1 * jax.random.normal(ks[12], (C,), dtype=jnp.float32)),
        bn_eps=1e-5,
    )

    ref = nl_block_ref(x, params)

    # Exact path (f32 MXU operands): tight check.
    out_f32 = jax.block_until_ready(nl_block_nd(x, params, mxu_dtype=jnp.float32))
    assert out_f32.shape == x.shape, out_f32.shape
    assert jnp.allclose(out_f32, ref, atol=1e-4, rtol=1e-4), (
        "f32 path mismatch: max abs err = "
        f"{float(jnp.max(jnp.abs(out_f32 - ref)))}")

    # Performance path (bf16 MXU operands, f32 softmax stats / accumulation):
    # looser tolerance accounts for bf16 operand rounding.
    out_bf16 = jax.block_until_ready(nl_block_nd(x, params, mxu_dtype=jnp.bfloat16))
    assert out_bf16.shape == x.shape, out_bf16.shape
    assert jnp.allclose(out_bf16, ref, atol=5e-2, rtol=5e-2), (
        "bf16 path mismatch: max abs err = "
        f"{float(jnp.max(jnp.abs(out_bf16 - ref)))}")

    print("KERNEL_OK")
</pallas_src>

<mosaic_0001>
module attributes {stable_mosaic.version = 11 : i64} {
  func.func @kernel(%arg0: i32, %arg1: i32, %arg2: memref<1x4x128xf32, #tpu.memory_space<vmem>>, %arg3: memref<128x4xf32, #tpu.memory_space<vmem>>, %arg4: memref<128x1xf32, #tpu.memory_space<vmem>>, %arg5: memref<128x4xf32, #tpu.memory_space<vmem>>, %arg6: memref<128x1xf32, #tpu.memory_space<vmem>>, %arg7: memref<128x4xf32, #tpu.memory_space<vmem>>, %arg8: memref<128x1xf32, #tpu.memory_space<vmem>>, %arg9: memref<4x128xf32, #tpu.memory_space<vmem>>, %arg10: memref<4x1xf32, #tpu.memory_space<vmem>>, %arg11: memref<1x4x128xf32, #tpu.memory_space<vmem>>) attributes {dimension_semantics = [#tpu.dimension_semantics<parallel>, #tpu.dimension_semantics<parallel>], iteration_bounds = array<i64: 2, 1>, scalar_prefetch = 0 : i64, scratch_operands = 0 : i64, tpu.core_type = #tpu.core_type<tc>, window_params = [{transform_indices = @transform_0, window_bounds = array<i64: 1, 4, 128>}, {pipeline_mode = #tpu.pipeline_mode<synchronous>, transform_indices = @transform_1, window_bounds = array<i64: 128, 4>}, {pipeline_mode = #tpu.pipeline_mode<synchronous>, transform_indices = @transform_2, window_bounds = array<i64: 128, 1>}, {pipeline_mode = #tpu.pipeline_mode<synchronous>, transform_indices = @transform_3, window_bounds = array<i64: 128, 4>}, {pipeline_mode = #tpu.pipeline_mode<synchronous>, transform_indices = @transform_4, window_bounds = array<i64: 128, 1>}, {pipeline_mode = #tpu.pipeline_mode<synchronous>, transform_indices = @transform_5, window_bounds = array<i64: 128, 4>}, {pipeline_mode = #tpu.pipeline_mode<synchronous>, transform_indices = @transform_6, window_bounds = array<i64: 128, 1>}, {pipeline_mode = #tpu.pipeline_mode<synchronous>, transform_indices = @transform_7, window_bounds = array<i64: 4, 128>}, {pipeline_mode = #tpu.pipeline_mode<synchronous>, transform_indices = @transform_8, window_bounds = array<i64: 4, 1>}, {transform_indices = @transform_9, window_bounds = array<i64: 1, 4, 128>}]} {
    %c128_i32 = arith.constant 128 : i32
    %0 = arith.muli %arg1, %c128_i32 : i32
    %1 = tpu.assume_multiple %0, 128 : i32
    %c0 = arith.constant 0 : index
    %c0_0 = arith.constant 0 : index
    %c0_1 = arith.constant 0 : index
    %2 = vector.load %arg2[%c0, %c0_0, %c0_1] : memref<1x4x128xf32, #tpu.memory_space<vmem>>, vector<1x4x128xf32>
    %3 = vector.shape_cast %2 : vector<1x4x128xf32> to vector<4x128xf32>
    %c0_2 = arith.constant 0 : index
    %c0_3 = arith.constant 0 : index
    %4 = arith.index_cast %1 : i32 to index
    %5 = vector.load %arg2[%c0_2, %c0_3, %4] : memref<1x4x128xf32, #tpu.memory_space<vmem>>, vector<1x4x128xf32>
    %6 = vector.shape_cast %5 : vector<1x4x128xf32> to vector<4x128xf32>
    %c0_4 = arith.constant 0 : index
    %c0_5 = arith.constant 0 : index
    %7 = vector.load %arg3[%c0_4, %c0_5] : memref<128x4xf32, #tpu.memory_space<vmem>>, vector<128x4xf32>
    %cst = arith.constant dense<0.000000e+00> : vector<128x128xf32>
    %8 = tpu.matmul %7, %6, %cst {dimension_numbers = #tpu.dot_dimension_numbers<[1], [0], [0], [1], [0, 0, 1, 1], [], []>} : vector<128x4xf32>, vector<4x128xf32>, vector<128x128xf32> -> vector<128x128xf32>
    %c0_6 = arith.constant 0 : index
    %c0_7 = arith.constant 0 : index
    %9 = vector.load %arg4[%c0_6, %c0_7] : memref<128x1xf32, #tpu.memory_space<vmem>>, vector<128x1xf32>
    %10 = vector.broadcast %9 : vector<128x1xf32> to vector<128x128xf32>
    %11 = arith.addf %8, %10 : vector<128x128xf32>
    %c0_8 = arith.constant 0 : index
    %c0_9 = arith.constant 0 : index
    %12 = vector.load %arg5[%c0_8, %c0_9] : memref<128x4xf32, #tpu.memory_space<vmem>>, vector<128x4xf32>
    %cst_10 = arith.constant dense<0.000000e+00> : vector<128x128xf32>
    %13 = tpu.matmul %12, %3, %cst_10 {dimension_numbers = #tpu.dot_dimension_numbers<[1], [0], [0], [1], [0, 0, 1, 1], [], []>} : vector<128x4xf32>, vector<4x128xf32>, vector<128x128xf32> -> vector<128x128xf32>
    %c0_11 = arith.constant 0 : index
    %c0_12 = arith.constant 0 : index
    %14 = vector.load %arg6[%c0_11, %c0_12] : memref<128x1xf32, #tpu.memory_space<vmem>>, vector<128x1xf32>
    %15 = vector.broadcast %14 : vector<128x1xf32> to vector<128x128xf32>
    %16 = arith.addf %13, %15 : vector<128x128xf32>
    %c0_13 = arith.constant 0 : index
    %c0_14 = arith.constant 0 : index
    %17 = vector.load %arg7[%c0_13, %c0_14] : memref<128x4xf32, #tpu.memory_space<vmem>>, vector<128x4xf32>
    %cst_15 = arith.constant dense<0.000000e+00> : vector<128x128xf32>
    %18 = tpu.matmul %17, %3, %cst_15 {dimension_numbers = #tpu.dot_dimension_numbers<[1], [0], [0], [1], [0, 0, 1, 1], [], []>} : vector<128x4xf32>, vector<4x128xf32>, vector<128x128xf32> -> vector<128x128xf32>
    %c0_16 = arith.constant 0 : index
    %c0_17 = arith.constant 0 : index
    %19 = vector.load %arg8[%c0_16, %c0_17] : memref<128x1xf32, #tpu.memory_space<vmem>>, vector<128x1xf32>
    %20 = vector.broadcast %19 : vector<128x1xf32> to vector<128x128xf32>
    %21 = arith.addf %18, %20 : vector<128x128xf32>
    %cst_18 = arith.constant dense<0.000000e+00> : vector<128x128xf32>
    %22 = tpu.matmul %11, %16, %cst_18 {dimension_numbers = #tpu.dot_dimension_numbers<[0], [0], [1], [1], [0, 1, 1, 1], [], []>} : vector<128x128xf32>, vector<128x128xf32>, vector<128x128xf32> -> vector<128x128xf32>
    %cst_19 = arith.constant dense<0xFF800000> : vector<128xf32>
    %23 = vector.multi_reduction <maximumf>, %22, %cst_19 [1] : vector<128x128xf32> to vector<128xf32>
    %24 = vector.shape_cast %23 : vector<128xf32> to vector<128x1xf32>
    %25 = vector.broadcast %24 : vector<128x1xf32> to vector<128x128xf32>
    %26 = arith.subf %22, %25 : vector<128x128xf32>
    %27 = math.exp %26 : vector<128x128xf32>
    %cst_20 = arith.constant dense<0.000000e+00> : vector<128x128xf32>
    %28 = tpu.matmul %21, %27, %cst_20 {dimension_numbers = #tpu.dot_dimension_numbers<[1], [1], [0], [0], [0, 0, 1, 0], [], []>} : vector<128x128xf32>, vector<128x128xf32>, vector<128x128xf32> -> vector<128x128xf32>
    %cst_21 = arith.constant 1.000000e+00 : f32
    %29 = vector.broadcast %cst_21 : f32 to vector<1x128xf32>
    %cst_22 = arith.constant dense<0.000000e+00> : vector<1x128xf32>
    %30 = tpu.matmul %29, %27, %cst_22 {dimension_numbers = #tpu.dot_dimension_numbers<[1], [1], [0], [0], [0, 0, 1, 0], [], []>} : vector<1x128xf32>, vector<128x128xf32>, vector<1x128xf32> -> vector<1x128xf32>
    %c0_23 = arith.constant 0 : index
    %c0_24 = arith.constant 0 : index
    %31 = vector.load %arg9[%c0_23, %c0_24] : memref<4x128xf32, #tpu.memory_space<vmem>>, vector<4x128xf32>
    %cst_25 = arith.constant dense<0.000000e+00> : vector<4x128xf32>
    %32 = tpu.matmul %31, %28, %cst_25 {dimension_numbers = #tpu.dot_dimension_numbers<[1], [0], [0], [1], [0, 0, 1, 1], [], []>} : vector<4x128xf32>, vector<128x128xf32>, vector<4x128xf32> -> vector<4x128xf32>
    %33 = tpu.reciprocal %30 : vector<1x128xf32> -> vector<1x128xf32>
    %34 = vector.broadcast %33 : vector<1x128xf32> to vector<4x128xf32>
    %35 = arith.mulf %32, %34 : vector<4x128xf32>
    %c0_26 = arith.constant 0 : index
    %c0_27 = arith.constant 0 : index
    %36 = vector.load %arg10[%c0_26, %c0_27] : memref<4x1xf32, #tpu.memory_space<vmem>>, vector<4x1xf32>
    %37 = vector.broadcast %36 : vector<4x1xf32> to vector<4x128xf32>
    %38 = arith.addf %35, %37 : vector<4x128xf32>
    %39 = arith.addf %38, %6 : vector<4x128xf32>
    %c0_28 = arith.constant 0 : index
    %c0_29 = arith.constant 0 : index
    %c0_30 = arith.constant 0 : index
    %40 = vector.load %arg11[%c0_28, %c0_29, %c0_30] : memref<1x4x128xf32, #tpu.memory_space<vmem>>, vector<1x4x128xf32>
    %41 = vector.shape_cast %40 : vector<1x4x128xf32> to vector<4x128xf32>
    %42 = vector.shape_cast %39 : vector<4x128xf32> to vector<1x4x128xf32>
    tpu.vector_store %arg11[%c0_28, %c0_29, %c0_30], %42 {strides = array<i32>} : memref<1x4x128xf32, #tpu.memory_space<vmem>>, vector<1x4x128xf32>,
    return
  }
  func.func @transform_0(%arg0: i32, %arg1: i32) -> (i32, i32, i32) {
    %c0_i32 = arith.constant 0 : i32
    %c0_i32_0 = arith.constant 0 : i32
    %c0_i32_1 = arith.constant 0 : i32
    return %arg0, %c0_i32, %c0_i32_0 : i32, i32, i32
  }
  func.func @transform_1(%arg0: i32, %arg1: i32) -> (i32, i32) {
    %c0_i32 = arith.constant 0 : i32
    %c0_i32_0 = arith.constant 0 : i32
    %c0_i32_1 = arith.constant 0 : i32
    return %c0_i32, %c0_i32_0 : i32, i32
  }
  func.func @transform_2(%arg0: i32, %arg1: i32) -> (i32, i32) {
    %c0_i32 = arith.constant 0 : i32
    %c0_i32_0 = arith.constant 0 : i32
    %c0_i32_1 = arith.constant 0 : i32
    return %c0_i32, %c0_i32_0 : i32, i32
  }
  func.func @transform_3(%arg0: i32, %arg1: i32) -> (i32, i32) {
    %c0_i32 = arith.constant 0 : i32
    %c0_i32_0 = arith.constant 0 : i32
    %c0_i32_1 = arith.constant 0 : i32
    return %c0_i32, %c0_i32_0 : i32, i32
  }
  func.func @transform_4(%arg0: i32, %arg1: i32) -> (i32, i32) {
    %c0_i32 = arith.constant 0 : i32
    %c0_i32_0 = arith.constant 0 : i32
    %c0_i32_1 = arith.constant 0 : i32
    return %c0_i32, %c0_i32_0 : i32, i32
  }
  func.func @transform_5(%arg0: i32, %arg1: i32) -> (i32, i32) {
    %c0_i32 = arith.constant 0 : i32
    %c0_i32_0 = arith.constant 0 : i32
    %c0_i32_1 = arith.constant 0 : i32
    return %c0_i32, %c0_i32_0 : i32, i32
  }
  func.func @transform_6(%arg0: i32, %arg1: i32) -> (i32, i32) {
    %c0_i32 = arith.constant 0 : i32
    %c0_i32_0 = arith.constant 0 : i32
    %c0_i32_1 = arith.constant 0 : i32
    return %c0_i32, %c0_i32_0 : i32, i32
  }
  func.func @transform_7(%arg0: i32, %arg1: i32) -> (i32, i32) {
    %c0_i32 = arith.constant 0 : i32
    %c0_i32_0 = arith.constant 0 : i32
    %c0_i32_1 = arith.constant 0 : i32
    return %c0_i32, %c0_i32_0 : i32, i32
  }
  func.func @transform_8(%arg0: i32, %arg1: i32) -> (i32, i32) {
    %c0_i32 = arith.constant 0 : i32
    %c0_i32_0 = arith.constant 0 : i32
    %c0_i32_1 = arith.constant 0 : i32
    return %c0_i32, %c0_i32_0 : i32, i32
  }
  func.func @transform_9(%arg0: i32, %arg1: i32) -> (i32, i32, i32) {
    %c0_i32 = arith.constant 0 : i32
    %c0_i32_0 = arith.constant 0 : i32
    return %arg0, %c0_i32, %arg1 : i32, i32, i32
  }
}

</mosaic_0001>

<llo_original>
// kernel: tpu_custom_call.1
$region0: #{tpu_custom_call.1}
  #allocation0 [shape = 'u32[]', space=smem, size = 0x4, offset = 0x4, fixed_abs, tag = 'smem constant byte address 0x4 - core index']
  #allocation1 [shape = 'u32[144,128]{1,0:T(1,128)}', space=vmem, size = 0x12000, scoped, tag = 'internal scratch']
  %s0 = inlined_call_operand.vmem [shape: f32[2,4,128], index: 0, kind: input, shape index: {}]
  %s1 = inlined_call_operand.vmem [shape: f32[128,4], index: 1, kind: input, shape index: {}]
  %s2 = inlined_call_operand.vmem [shape: f32[128,1], index: 2, kind: input, shape index: {}]
  %s3 = inlined_call_operand.vmem [shape: f32[128,4], index: 3, kind: input, shape index: {}]
  %s4 = inlined_call_operand.vmem [shape: f32[128,1], index: 4, kind: input, shape index: {}]
  %s5 = inlined_call_operand.vmem [shape: f32[128,4], index: 5, kind: input, shape index: {}]
  %s6 = inlined_call_operand.vmem [shape: f32[128,1], index: 6, kind: input, shape index: {}]
  %s7 = inlined_call_operand.vmem [shape: f32[4,128], index: 7, kind: input, shape index: {}]
  %s8 = inlined_call_operand.vmem [shape: f32[4,1], index: 8, kind: input, shape index: {}]
  %s9 = inlined_call_operand.hbm [shape: f32[2,4,128], index: 9, kind: output, shape index: {}]
  %s10 = sld [smem:[#allocation0]]
  $region69: #{tpu_custom_call.1} parent=0
    _
  %s12 = ssub.s32 1, %s10
  %s13 = scalar_select 0, %s12, %s10
  $region1: #{tpu_custom_call.1} parent=0
    #allocation2 [shape = 'u8[4096]{0}', space=vmem, size = 0x1000, scoped, tag = 'output window, operand 0']
    #allocation3 [shape = 's32[2]{0}', space=sflag, size = 0x8, scoped, tag = 'scoped memory for tpu_custom_call.1']
    %14 = vsyncpa [#allocation3], 0
    %s15 = scalar_lea.sflag [#allocation3], 1
    %16 = vsyncpa %s15, 0
    loop: start=0, step=1, limit=4
    $region2: #{tpu_custom_call.1} parent=1 // loop_pre_header
      _
    $region3: #{tpu_custom_call.1} parent=1 // loop_header
      %s18 = sphi 0, %s22
      %p19 = scmp.ge.s32.totalorder %s18, 4
      %s25 = sphi 0, %s37
      %s26 = sphi 0, %s33
      %s27 = sphi 0, %s25
      %s28 = sphi 0, %s26
      %s29 = sphi 0, %s27
      %s30 = sphi 0, %s28
      %s40 = sphi 0, %s42
      %s43 = sphi 0, %s40
      %s44 = sphi 0, %s43
      %s60 = sphi 0, %s44
      %s64 = sphi 0, %s64
      %s66 = sphi 0, %s64
      %s67 = sphi 0, %s66
      %s81 = sphi 0, %s67
      %s85 = sphi 0, %s85
      %s87 = sphi 0, %s85
      %s88 = sphi 0, %s87
      %s102 = sphi 0, %s88
      %s106 = sphi 0, %s106
      %s108 = sphi 0, %s106
      %s109 = sphi 0, %s108
      %s123 = sphi 0, %s109
      %s127 = sphi 0, %s127
      %s129 = sphi 0, %s127
      %s130 = sphi 0, %s129
      %s144 = sphi 0, %s130
      %s148 = sphi 0, %s148
      %s150 = sphi 0, %s148
      %s151 = sphi 0, %s150
      %s165 = sphi 0, %s151
      %s169 = sphi 0, %s169
      %s171 = sphi 0, %s169
      %s172 = sphi 0, %s171
      %s186 = sphi 0, %s172
      %s190 = sphi 0, %s190
      %s192 = sphi 0, %s190
      %s193 = sphi 0, %s192
      %s207 = sphi 0, %s193
      %s211 = sphi 0, %s211
      %s213 = sphi 0, %s211
      %s214 = sphi 0, %s213
      %s228 = sphi 0, %s214
      %s236 = sphi 0, %s238
      %s239 = sphi 0, %s236
      %s240 = sphi 0, %s239
      %s256 = sphi 0, %s240
    $region4: #{tpu_custom_call.1} parent=1 // loop_header_branch
      %21 = sbr.rel (%p19) target = $region8
    $region5: #{tpu_custom_call.1} parent=1 // loop_body
      %s23 = ssub.s32 %s18, 1
      %s24 = ssub.s32 %s18, 2
      %s31 = sadd.s32 1, %s26
      %p32 = scmp.ge.s32.totalorder %s31, 1
      %s33 = scalar_select %p32, 0, %s31
      %s34 = sadd.s32 1, %s25
      %s35 = scalar_select %p32, %s34, %s25
      %p36 = scmp.ge.s32.totalorder %s35, 2
      %s37 = scalar_select %p36, 0, %s35
      %s38 = ssub.s32 %s25, %s37
      %p39 = scmp.eq.s32.totalorder %s38, 0
      %s41 = sadd.s32 %s40, 1
      %s42 = scalar_select %p39, %s40, %s41
      %p45 = pneg %p39
      %p46 = scmp.eq.s32.totalorder %s18, 1
      %p47 = por %p45, %p46
      %p48 = scmp.ne.s32.totalorder %s40, %s43
      %p49 = scmp.eq.s32.totalorder %s18, 0
      %p50 = por %p48, %p49
      %p51 = scmp.ne.s32.totalorder %s40, %s43
      %p52 = scmp.eq.s32.totalorder %s23, 1
      %p53 = por %p51, %p52
      %p54 = scmp.ne.s32.totalorder %s43, %s44
      %p55 = scmp.eq.s32.totalorder %s23, 0
      %p56 = por %p54, %p55
      %p57 = scmp.ne.s32.totalorder %s43, %s44
      %p58 = scmp.eq.s32.totalorder %s24, 1
      %p59 = por %p57, %p58
      %p61 = scmp.ne.s32.totalorder %s44, %s60
      %p62 = scmp.eq.s32.totalorder %s24, 0
      %p63 = por %p61, %p62
      %s65 = sadd.s32 %s64, 1
      %p68 = scmp.eq.s32.totalorder %s18, 1
      %p69 = scmp.ne.s32.totalorder %s64, %s66
      %p70 = scmp.eq.s32.totalorder %s18, 0
      %p71 = por %p69, %p70
      %p72 = scmp.ne.s32.totalorder %s64, %s66
      %p73 = scmp.eq.s32.totalorder %s23, 1
      %p74 = por %p72, %p73
      %p75 = scmp.ne.s32.totalorder %s66, %s67
      %p76 = scmp.eq.s32.totalorder %s23, 0
      %p77 = por %p75, %p76
      %p78 = scmp.ne.s32.totalorder %s66, %s67
      %p79 = scmp.eq.s32.totalorder %s24, 1
      %p80 = por %p78, %p79
      %p82 = scmp.ne.s32.totalorder %s67, %s81
      %p83 = scmp.eq.s32.totalorder %s24, 0
      %p84 = por %p82, %p83
      %s86 = sadd.s32 %s85, 1
      %p89 = scmp.eq.s32.totalorder %s18, 1
      %p90 = scmp.ne.s32.totalorder %s85, %s87
      %p91 = scmp.eq.s32.totalorder %s18, 0
      %p92 = por %p90, %p91
      %p93 = scmp.ne.s32.totalorder %s85, %s87
      %p94 = scmp.eq.s32.totalorder %s23, 1
      %p95 = por %p93, %p94
      %p96 = scmp.ne.s32.totalorder %s87, %s88
      %p97 = scmp.eq.s32.totalorder %s23, 0
      %p98 = por %p96, %p97
      %p99 = scmp.ne.s32.totalorder %s87, %s88
      %p100 = scmp.eq.s32.totalorder %s24, 1
      %p101 = por %p99, %p100
      %p103 = scmp.ne.s32.totalorder %s88, %s102
      %p104 = scmp.eq.s32.totalorder %s24, 0
      %p105 = por %p103, %p104
      %s107 = sadd.s32 %s106, 1
      %p110 = scmp.eq.s32.totalorder %s18, 1
      %p111 = scmp.ne.s32.totalorder %s106, %s108
      %p112 = scmp.eq.s32.totalorder %s18, 0
      %p113 = por %p111, %p112
      %p114 = scmp.ne.s32.totalorder %s106, %s108
      %p115 = scmp.eq.s32.totalorder %s23, 1
      %p116 = por %p114, %p115
      %p117 = scmp.ne.s32.totalorder %s108, %s109
      %p118 = scmp.eq.s32.totalorder %s23, 0
      %p119 = por %p117, %p118
      %p120 = scmp.ne.s32.totalorder %s108, %s109
      %p121 = scmp.eq.s32.totalorder %s24, 1
      %p122 = por %p120, %p121
      %p124 = scmp.ne.s32.totalorder %s109, %s123
      %p125 = scmp.eq.s32.totalorder %s24, 0
      %p126 = por %p124, %p125
      %s128 = sadd.s32 %s127, 1
      %p131 = scmp.eq.s32.totalorder %s18, 1
      %p132 = scmp.ne.s32.totalorder %s127, %s129
      %p133 = scmp.eq.s32.totalorder %s18, 0
      %p134 = por %p132, %p133
      %p135 = scmp.ne.s32.totalorder %s127, %s129
      %p136 = scmp.eq.s32.totalorder %s23, 1
      %p137 = por %p135, %p136
      %p138 = scmp.ne.s32.totalorder %s129, %s130
      %p139 = scmp.eq.s32.totalorder %s23, 0
      %p140 = por %p138, %p139
      %p141 = scmp.ne.s32.totalorder %s129, %s130
      %p142 = scmp.eq.s32.totalorder %s24, 1
      %p143 = por %p141, %p142
      %p145 = scmp.ne.s32.totalorder %s130, %s144
      %p146 = scmp.eq.s32.totalorder %s24, 0
      %p147 = por %p145, %p146
      %s149 = sadd.s32 %s148, 1
      %p152 = scmp.eq.s32.totalorder %s18, 1
      %p153 = scmp.ne.s32.totalorder %s148, %s150
      %p154 = scmp.eq.s32.totalorder %s18, 0
      %p155 = por %p153, %p154
      %p156 = scmp.ne.s32.totalorder %s148, %s150
      %p157 = scmp.eq.s32.totalorder %s23, 1
      %p158 = por %p156, %p157
      %p159 = scmp.ne.s32.totalorder %s150, %s151
      %p160 = scmp.eq.s32.totalorder %s23, 0
      %p161 = por %p159, %p160
      %p162 = scmp.ne.s32.totalorder %s150, %s151
      %p163 = scmp.eq.s32.totalorder %s24, 1
      %p164 = por %p162, %p163
      %p166 = scmp.ne.s32.totalorder %s151, %s165
      %p167 = scmp.eq.s32.totalorder %s24, 0
      %p168 = por %p166, %p167
      %s170 = sadd.s32 %s169, 1
      %p173 = scmp.eq.s32.totalorder %s18, 1
      %p174 = scmp.ne.s32.totalorder %s169, %s171
      %p175 = scmp.eq.s32.totalorder %s18, 0
      %p176 = por %p174, %p175
      %p177 = scmp.ne.s32.totalorder %s169, %s171
      %p178 = scmp.eq.s32.totalorder %s23, 1
      %p179 = por %p177, %p178
      %p180 = scmp.ne.s32.totalorder %s171, %s172
      %p181 = scmp.eq.s32.totalorder %s23, 0
      %p182 = por %p180, %p181
      %p183 = scmp.ne.s32.totalorder %s171, %s172
      %p184 = scmp.eq.s32.totalorder %s24, 1
      %p185 = por %p183, %p184
      %p187 = scmp.ne.s32.totalorder %s172, %s186
      %p188 = scmp.eq.s32.totalorder %s24, 0
      %p189 = por %p187, %p188
      %s191 = sadd.s32 %s190, 1
      %p194 = scmp.eq.s32.totalorder %s18, 1
      %p195 = scmp.ne.s32.totalorder %s190, %s192
      %p196 = scmp.eq.s32.totalorder %s18, 0
      %p197 = por %p195, %p196
      %p198 = scmp.ne.s32.totalorder %s190, %s192
      %p199 = scmp.eq.s32.totalorder %s23, 1
      %p200 = por %p198, %p199
      %p201 = scmp.ne.s32.totalorder %s192, %s193
      %p202 = scmp.eq.s32.totalorder %s23, 0
      %p203 = por %p201, %p202
      %p204 = scmp.ne.s32.totalorder %s192, %s193
      %p205 = scmp.eq.s32.totalorder %s24, 1
      %p206 = por %p204, %p205
      %p208 = scmp.ne.s32.totalorder %s193, %s207
      %p209 = scmp.eq.s32.totalorder %s24, 0
      %p210 = por %p208, %p209
      %s212 = sadd.s32 %s211, 1
      %p215 = scmp.eq.s32.totalorder %s18, 1
      %p216 = scmp.ne.s32.totalorder %s211, %s213
      %p217 = scmp.eq.s32.totalorder %s18, 0
      %p218 = por %p216, %p217
      %p219 = scmp.ne.s32.totalorder %s211, %s213
      %p220 = scmp.eq.s32.totalorder %s23, 1
      %p221 = por %p219, %p220
      %p222 = scmp.ne.s32.totalorder %s213, %s214
      %p223 = scmp.eq.s32.totalorder %s23, 0
      %p224 = por %p222, %p223
      %p225 = scmp.ne.s32.totalorder %s213, %s214
      %p226 = scmp.eq.s32.totalorder %s24, 1
      %p227 = por %p225, %p226
      %p229 = scmp.ne.s32.totalorder %s214, %s228
      %p230 = scmp.eq.s32.totalorder %s24, 0
      %p231 = por %p229, %p230
      %s232 = ssub.s32 %s25, %s37
      %s233 = ssub.s32 %s26, %s33
      %s234 = sor.u32 %s232, %s233
      %p235 = scmp.eq.s32.totalorder %s234, 0
      %s237 = sadd.s32 %s236, 1
      %s238 = scalar_select %p235, %s236, %s237
      %p241 = pneg %p235
      %p242 = scmp.eq.s32.totalorder %s18, 1
      %p243 = por %p241, %p242
      %p244 = scmp.ne.s32.totalorder %s236, %s239
      %p245 = scmp.eq.s32.totalorder %s18, 0
      %p246 = por %p244, %p245
      %p247 = scmp.ne.s32.totalorder %s236, %s239
      %p248 = scmp.eq.s32.totalorder %s23, 1
      %p249 = por %p247, %p248
      %p250 = scmp.ne.s32.totalorder %s239, %s240
      %p251 = scmp.eq.s32.totalorder %s23, 0
      %p252 = por %p250, %p251
      %p253 = scmp.ne.s32.totalorder %s239, %s240
      %p254 = scmp.eq.s32.totalorder %s24, 1
      %p255 = por %p253, %p254
      %p257 = scmp.ne.s32.totalorder %s240, %s256
      %p258 = scmp.eq.s32.totalorder %s24, 0
      %p259 = por %p257, %p258
      %p260 = scmp.le.s32.totalorder 1, %s18
      %p261 = scmp.lt.s32.totalorder %s18, 3
      %p262 = pnand %p260, %p261
      %p263 = pneg %p262
      // Predicated region
      $region9: #{tpu_custom_call.1} parent=5 // pred_check
        _
      $region10: #{tpu_custom_call.1} parent=5 // pred_check_branch
        %265 = sbr.rel (%p262) target = $region12
      $region11: #{tpu_custom_call.1} parent=5 // pred_region
        %s266 = ssub.s32 %s18, 1
        // Predicated region
        $region13: #{tpu_custom_call.1} parent=11 // pred_check
          %p267 = pneg %p77
        $region14: #{tpu_custom_call.1} parent=11 // pred_check_branch
          %269 = sbr.rel (%p267) target = $region16
        $region15: #{tpu_custom_call.1} parent=11 // pred_region
          _
        $region16: #{tpu_custom_call.1} parent=11 // pred_fallthru
          _
        // Predicated region
        $region17: #{tpu_custom_call.1} parent=11 // pred_check
          %p270 = pneg %p98
        $region18: #{tpu_custom_call.1} parent=11 // pred_check_branch
          %272 = sbr.rel (%p270) target = $region20
        $region19: #{tpu_custom_call.1} parent=11 // pred_region
          _
        $region20: #{tpu_custom_call.1} parent=11 // pred_fallthru
          _
        // Predicated region
        $region21: #{tpu_custom_call.1} parent=11 // pred_check
          %p273 = pneg %p119
        $region22: #{tpu_custom_call.1} parent=11 // pred_check_branch
          %275 = sbr.rel (%p273) target = $region24
        $region23: #{tpu_custom_call.1} parent=11 // pred_region
          _
        $region24: #{tpu_custom_call.1} parent=11 // pred_fallthru
          _
        // Predicated region
        $region25: #{tpu_custom_call.1} parent=11 // pred_check
          %p276 = pneg %p140
        $region26: #{tpu_custom_call.1} parent=11 // pred_check_branch
          %278 = sbr.rel (%p276) target = $region28
        $region27: #{tpu_custom_call.1} parent=11 // pred_region
          _
        $region28: #{tpu_custom_call.1} parent=11 // pred_fallthru
          _
        // Predicated region
        $region29: #{tpu_custom_call.1} parent=11 // pred_check
          %p279 = pneg %p161
        $region30: #{tpu_custom_call.1} parent=11 // pred_check_branch
          %281 = sbr.rel (%p279) target = $region32
        $region31: #{tpu_custom_call.1} parent=11 // pred_region
          _
        $region32: #{tpu_custom_call.1} parent=11 // pred_fallthru
          _
        // Predicated region
        $region33: #{tpu_custom_call.1} parent=11 // pred_check
          %p282 = pneg %p182
        $region34: #{tpu_custom_call.1} parent=11 // pred_check_branch
          %284 = sbr.rel (%p282) target = $region36
        $region35: #{tpu_custom_call.1} parent=11 // pred_region
          _
        $region36: #{tpu_custom_call.1} parent=11 // pred_fallthru
          _
        // Predicated region
        $region37: #{tpu_custom_call.1} parent=11 // pred_check
          %p285 = pneg %p203
        $region38: #{tpu_custom_call.1} parent=11 // pred_check_branch
          %287 = sbr.rel (%p285) target = $region40
        $region39: #{tpu_custom_call.1} parent=11 // pred_region
          _
        $region40: #{tpu_custom_call.1} parent=11 // pred_fallthru
          _
        // Predicated region
        $region41: #{tpu_custom_call.1} parent=11 // pred_check
          %p288 = pneg %p224
        $region42: #{tpu_custom_call.1} parent=11 // pred_check_branch
          %290 = sbr.rel (%p288) target = $region44
        $region43: #{tpu_custom_call.1} parent=11 // pred_region
          _
        $region44: #{tpu_custom_call.1} parent=11 // pred_fallthru
          _
      $region12: #{tpu_custom_call.1} parent=5 // pred_fallthru
        _
      %p291 = scmp.lt.s32.totalorder %s18, 2
      // Predicated region
      $region45: #{tpu_custom_call.1} parent=5 // pred_check
        %p292 = pneg %p291
      $region46: #{tpu_custom_call.1} parent=5 // pred_check_branch
        %294 = sbr.rel (%p292) target = $region48
      $region47: #{tpu_custom_call.1} parent=5 // pred_region
        // Predicated region
        $region49: #{tpu_custom_call.1} parent=47 // pred_check
          %p295 = pneg %p50
        $region50: #{tpu_custom_call.1} parent=47 // pred_check_branch
          %297 = sbr.rel (%p295) target = $region52
        $region51: #{tpu_custom_call.1} parent=47 // pred_region
          %p298 = scmp.lt.s32.totalorder %s25, 1
          %s299 = scalar_select %p298, %s25, 1
          %s300 = smul.addr %s299, 4
          %s301 = scalar_lea.vmem %s0, %s300
        $region52: #{tpu_custom_call.1} parent=47 // pred_fallthru
          _
      $region48: #{tpu_custom_call.1} parent=5 // pred_fallthru
        _
      %p302 = scmp.le.s32.totalorder 1, %s18
      %p303 = scmp.lt.s32.totalorder %s18, 3
      %p304 = pnand %p302, %p303
      %p305 = pneg %p304
      // Predicated region
      $region53: #{tpu_custom_call.1} parent=5 // pred_check
        _
      $region54: #{tpu_custom_call.1} parent=5 // pred_check_branch
        %307 = sbr.rel (%p304) target = $region56
      $region55: #{tpu_custom_call.1} parent=5 // pred_region
        %s308 = ssub.s32 %s18, 1
        %p309 = scmp.lt.s32.totalorder %s27, 1
        %s310 = scalar_select %p309, %s27, 1
        %s311 = smul.addr %s310, 4
        %s312 = scalar_lea.vmem %s0, %s311
        %p313 = pneg %p56
        %p314 = pneg %p53
        %p315 = pneg %p77
        %p316 = pneg %p74
        %p317 = pneg %p98
        %p318 = pneg %p95
        %p319 = pneg %p119
        %p320 = pneg %p116
        %p321 = pneg %p140
        %p322 = pneg %p137
        %p323 = pneg %p161
        %p324 = pneg %p158
        %p325 = pneg %p182
        %p326 = pneg %p179
        %p327 = pneg %p203
        %p328 = pneg %p200
        %p329 = pneg %p224
        %p330 = pneg %p221
        %p331 = pneg %p252
        %p332 = pneg %p249
        %s333 = sand.u32 %s239, 1
        %s334 = scalar_lea.sflag [#allocation3], %s333
        %s335 = sand.u32 %s239, 1
        %s336 = smul.addr %s335, 4
        %s337 = scalar_lea.vmem [#allocation2], %s336
        %p338 = scmp.lt.s32.totalorder %s27, 1
        %s339 = scalar_select %p338, %s27, 1
        %s340 = smul.addr %s339, 4
        %s341 = scalar_lea.vmem %s0, %s340
        %s342 = smul.u32 %s28, 128
        %v343 = vld [vmem:[%s341] sm:$0xf]
        %s344 = sshra.s32 %s342, 7
        %s345 = sand.u32 %s342, 127
        %s346 = scalar_lea.vmem %s341, %s344
        %v347 = vld [vmem:[%s346] sm:$0xf]
        %v348 = vld [vmem:[%s1] sm:$0xff]
        %v349 = vld [vmem:[%s1 + $0x8] sm:$0xff]
        %v350 = vld [vmem:[%s1 + $0x10] sm:$0xff]
        %v351 = vld [vmem:[%s1 + $0x18] sm:$0xff]
        %v352 = vld [vmem:[%s1 + $0x20] sm:$0xff]
        %v353 = vld [vmem:[%s1 + $0x28] sm:$0xff]
        %v354 = vld [vmem:[%s1 + $0x30] sm:$0xff]
        %v355 = vld [vmem:[%s1 + $0x38] sm:$0xff]
        %v356 = vld [vmem:[%s1 + $0x40] sm:$0xff]
        %v357 = vld [vmem:[%s1 + $0x48] sm:$0xff]
        %v358 = vld [vmem:[%s1 + $0x50] sm:$0xff]
        %v359 = vld [vmem:[%s1 + $0x58] sm:$0xff]
        %v360 = vld [vmem:[%s1 + $0x60] sm:$0xff]
        %v361 = vld [vmem:[%s1 + $0x68] sm:$0xff]
        %v362 = vld [vmem:[%s1 + $0x70] sm:$0xff]
        %v363 = vld [vmem:[%s1 + $0x78] sm:$0xff]
        %v364 = vld [vmem:[%s2] sm:$0xff]
        %v365 = vld [vmem:[%s2 + $0x8] sm:$0xff]
        %v366 = vld [vmem:[%s2 + $0x10] sm:$0xff]
        %v367 = vld [vmem:[%s2 + $0x18] sm:$0xff]
        %v368 = vld [vmem:[%s2 + $0x20] sm:$0xff]
        %v369 = vld [vmem:[%s2 + $0x28] sm:$0xff]
        %v370 = vld [vmem:[%s2 + $0x30] sm:$0xff]
        %v371 = vld [vmem:[%s2 + $0x38] sm:$0xff]
        %v372 = vld [vmem:[%s2 + $0x40] sm:$0xff]
        %v373 = vld [vmem:[%s2 + $0x48] sm:$0xff]
        %v374 = vld [vmem:[%s2 + $0x50] sm:$0xff]
        %v375 = vld [vmem:[%s2 + $0x58] sm:$0xff]
        %v376 = vld [vmem:[%s2 + $0x60] sm:$0xff]
        %v377 = vld [vmem:[%s2 + $0x68] sm:$0xff]
        %v378 = vld [vmem:[%s2 + $0x70] sm:$0xff]
        %v379 = vld [vmem:[%s2 + $0x78] sm:$0xff]
        %381 = vset.pattern.permute.xlu0 0
        %382 = vperm.xlu0 %381, %v364
        %v383 = vpop.permute.xlu0 %382
        %386 = vset.pattern.permute.xlu0 0
        %387 = vperm.xlu0 %386, %v365
        %v388 = vpop.permute.xlu0 %387
        %391 = vset.pattern.permute.xlu0 0
        %392 = vperm.xlu0 %391, %v366
        %v393 = vpop.permute.xlu0 %392
        %396 = vset.pattern.permute.xlu0 0
        %397 = vperm.xlu0 %396, %v367
        %v398 = vpop.permute.xlu0 %397
        %401 = vset.pattern.permute.xlu0 0
        %402 = vperm.xlu0 %401, %v368
        %v403 = vpop.permute.xlu0 %402
        %406 = vset.pattern.permute.xlu0 0
        %407 = vperm.xlu0 %406, %v369
        %v408 = vpop.permute.xlu0 %407
        %411 = vset.pattern.permute.xlu0 0
        %412 = vperm.xlu0 %411, %v370
        %v413 = vpop.permute.xlu0 %412
        %416 = vset.pattern.permute.xlu0 0
        %417 = vperm.xlu0 %416, %v371
        %v418 = vpop.permute.xlu0 %417
        %421 = vset.pattern.permute.xlu0 0
        %422 = vperm.xlu0 %421, %v372
        %v423 = vpop.permute.xlu0 %422
        %426 = vset.pattern.permute.xlu0 0
        %427 = vperm.xlu0 %426, %v373
        %v428 = vpop.permute.xlu0 %427
        %431 = vset.pattern.permute.xlu0 0
        %432 = vperm.xlu0 %431, %v374
        %v433 = vpop.permute.xlu0 %432
        %436 = vset.pattern.permute.xlu0 0
        %437 = vperm.xlu0 %436, %v375
        %v438 = vpop.permute.xlu0 %437
        %441 = vset.pattern.permute.xlu0 0
        %442 = vperm.xlu0 %441, %v376
        %v443 = vpop.permute.xlu0 %442
        %446 = vset.pattern.permute.xlu0 0
        %447 = vperm.xlu0 %446, %v377
        %v448 = vpop.permute.xlu0 %447
        %451 = vset.pattern.permute.xlu0 0
        %452 = vperm.xlu0 %451, %v378
        %v453 = vpop.permute.xlu0 %452
        %456 = vset.pattern.permute.xlu0 0
        %457 = vperm.xlu0 %456, %v379
        %v458 = vpop.permute.xlu0 %457
        %vm460 = vcmask 31744
        %v462 = vsel %vm460, %v348, 0
        %v465 = vsel %vm460, %v349, 0
        %v468 = vsel %vm460, %v350, 0
        %v471 = vsel %vm460, %v351, 0
        %v474 = vsel %vm460, %v352, 0
        %v477 = vsel %vm460, %v353, 0
        %v480 = vsel %vm460, %v354, 0
        %v483 = vsel %vm460, %v355, 0
        %v486 = vsel %vm460, %v356, 0
        %v489 = vsel %vm460, %v357, 0
        %v492 = vsel %vm460, %v358, 0
        %v495 = vsel %vm460, %v359, 0
        %v498 = vsel %vm460, %v360, 0
        %v501 = vsel %vm460, %v361, 0
        %v504 = vsel %vm460, %v362, 0
        %v507 = vsel %vm460, %v363, 0
        %vm509 = vcmask 1043456
        %v511 = vsel %vm509, %v347, 0
        %513 = vmatprep.subr.mxu0 0.0
        %514 = vmatpush1.msra.mxu0 %v511
        %515 = vmatprep.subr.mxu0 0.0
        %516 = vmatpush1.msra.mxu0 0.0
        %517 = vmatprep.subr.mxu0 0.0
        %518 = vmatpush1.msra.mxu0 0.0
        %519 = vmatprep.subr.mxu0 0.0
        %520 = vmatpush1.msra.mxu0 0.0
        %521 = vmatprep.subr.mxu0 0.0
        %522 = vmatpush1.msra.mxu0 0.0
        %523 = vmatprep.subr.mxu0 0.0
        %524 = vmatpush1.msra.mxu0 0.0
        %525 = vmatprep.subr.mxu0 0.0
        %526 = vmatpush1.msra.mxu0 0.0
        %527 = vmatprep.subr.mxu0 0.0
        %528 = vmatpush1.msra.mxu0 0.0
        %529 = vmatprep.subr.mxu0 0.0
        %530 = vmatpush1.msra.mxu0 0.0
        %531 = vmatprep.subr.mxu0 0.0
        %532 = vmatpush1.msra.mxu0 0.0
        %533 = vmatprep.subr.mxu0 0.0
        %534 = vmatpush1.msra.mxu0 0.0
        %535 = vmatprep.subr.mxu0 0.0
        %536 = vmatpush1.msra.mxu0 0.0
        %537 = vmatprep.subr.mxu0 0.0
        %538 = vmatpush1.msra.mxu0 0.0
        %539 = vmatprep.subr.mxu0 0.0
        %540 = vmatpush1.msra.mxu0 0.0
        %541 = vmatprep.subr.mxu0 0.0
        %542 = vmatpush1.msra.mxu0 0.0
        %543 = vmatprep.subr.mxu0 0.0
        %544 = vmatpush1.msra.mxu0 0.0
        %545 = vmatprep.subr.mxu0 0.0
        %546 = vmatpush1.msra.mxu0 0.0
        %547 = vmatprep.subr.mxu0 0.0
        %548 = vmatpush1.msra.mxu0 0.0
        %549 = vmatprep.subr.mxu0 0.0
        %550 = vmatpush1.msra.mxu0 0.0
        %551 = vmatprep.subr.mxu0 0.0
        %552 = vmatpush1.msra.mxu0 0.0
        %553 = vmatprep.subr.mxu0 0.0
        %554 = vmatpush1.msra.mxu0 0.0
        %555 = vmatprep.subr.mxu0 0.0
        %556 = vmatpush1.msra.mxu0 0.0
        %557 = vmatprep.subr.mxu0 0.0
        %558 = vmatpush1.msra.mxu0 0.0
        %559 = vmatprep.subr.mxu0 0.0
        %560 = vmatpush1.msra.mxu0 0.0
        %561 = vmatprep.subr.mxu0 0.0
        %562 = vmatpush1.msra.mxu0 0.0
        %563 = vmatprep.subr.mxu0 0.0
        %564 = vmatpush1.msra.mxu0 0.0
        %565 = vmatprep.subr.mxu0 0.0
        %566 = vmatpush1.msra.mxu0 0.0
        %567 = vmatprep.subr.mxu0 0.0
        %568 = vmatpush1.msra.mxu0 0.0
        %569 = vmatprep.subr.mxu0 0.0
        %570 = vmatpush1.msra.mxu0 0.0
        %571 = vmatprep.subr.mxu0 0.0
        %572 = vmatpush1.msra.mxu0 0.0
        %573 = vmatprep.subr.mxu0 0.0
        %574 = vmatpush1.msra.mxu0 0.0
        %575 = vmatprep.subr.mxu0 0.0
        %576 = vmatpush1.msra.mxu0 0.0
        %577 = vmatprep.mubr.f32.mxu0 0.0
        %578 = vmatmul.mubr.f32.gmra.mrb[0].mxu0 %v462
        %v579 = vpop.f32.mrb[0].mxu0
        %v580 = vadd.f32 %v383, %v579
        %v581 = vpop.f32.mrb[0].mxu0
        %582 = vmatprep.mubr.f32.mxu0 0.0
        %583 = vmatmul.mubr.f32.gmra.mrb[0].mxu0 %v465
        %v584 = vpop.f32.mrb[0].mxu0
        %v585 = vadd.f32 %v388, %v584
        %v586 = vpop.f32.mrb[0].mxu0
        %587 = vmatprep.mubr.f32.mxu0 0.0
        %588 = vmatmul.mubr.f32.gmra.mrb[0].mxu0 %v468
        %v589 = vpop.f32.mrb[0].mxu0
        %v590 = vadd.f32 %v393, %v589
        %v591 = vpop.f32.mrb[0].mxu0
        %592 = vmatprep.mubr.f32.mxu0 0.0
        %593 = vmatmul.mubr.f32.gmra.mrb[0].mxu0 %v471
        %v594 = vpop.f32.mrb[0].mxu0
        %v595 = vadd.f32 %v398, %v594
        %v596 = vpop.f32.mrb[0].mxu0
        %597 = vmatprep.mubr.f32.mxu0 0.0
        %598 = vmatmul.mubr.f32.gmra.mrb[0].mxu0 %v474
        %v599 = vpop.f32.mrb[0].mxu0
        %v600 = vadd.f32 %v403, %v599
        %v601 = vpop.f32.mrb[0].mxu0
        %602 = vmatprep.mubr.f32.mxu0 0.0
        %603 = vmatmul.mubr.f32.gmra.mrb[0].mxu0 %v477
        %v604 = vpop.f32.mrb[0].mxu0
        %v605 = vadd.f32 %v408, %v604
        %v606 = vpop.f32.mrb[0].mxu0
        %607 = vmatprep.mubr.f32.mxu0 0.0
        %608 = vmatmul.mubr.f32.gmra.mrb[0].mxu0 %v480
        %v609 = vpop.f32.mrb[0].mxu0
        %v610 = vadd.f32 %v413, %v609
        %v611 = vpop.f32.mrb[0].mxu0
        %612 = vmatprep.mubr.f32.mxu0 0.0
        %613 = vmatmul.mubr.f32.gmra.mrb[0].mxu0 %v483
        %v614 = vpop.f32.mrb[0].mxu0
        %v615 = vadd.f32 %v418, %v614
        %v616 = vpop.f32.mrb[0].mxu0
        %617 = vmatprep.mubr.f32.mxu0 0.0
        %618 = vmatmul.mubr.f32.gmra.mrb[0].mxu0 %v486
        %v619 = vpop.f32.mrb[0].mxu0
        %v620 = vadd.f32 %v423, %v619
        %v621 = vpop.f32.mrb[0].mxu0
        %622 = vmatprep.mubr.f32.mxu0 0.0
        %623 = vmatmul.mubr.f32.gmra.mrb[0].mxu0 %v489
        %v624 = vpop.f32.mrb[0].mxu0
        %v625 = vadd.f32 %v428, %v624
        %v626 = vpop.f32.mrb[0].mxu0
        %627 = vmatprep.mubr.f32.mxu0 0.0
        %628 = vmatmul.mubr.f32.gmra.mrb[0].mxu0 %v492
        %v629 = vpop.f32.mrb[0].mxu0
        %v630 = vadd.f32 %v433, %v629
        %v631 = vpop.f32.mrb[0].mxu0
        %632 = vmatprep.mubr.f32.mxu0 0.0
        %633 = vmatmul.mubr.f32.gmra.mrb[0].mxu0 %v495
        %v634 = vpop.f32.mrb[0].mxu0
        %v635 = vadd.f32 %v438, %v634
        %v636 = vpop.f32.mrb[0].mxu0
        %637 = vmatprep.mubr.f32.mxu0 0.0
        %638 = vmatmul.mubr.f32.gmra.mrb[0].mxu0 %v498
        %v639 = vpop.f32.mrb[0].mxu0
        %v640 = vadd.f32 %v443, %v639
        %v641 = vpop.f32.mrb[0].mxu0
        %642 = vmatprep.mubr.f32.mxu0 0.0
        %643 = vmatmul.mubr.f32.gmra.mrb[0].mxu0 %v501
        %v644 = vpop.f32.mrb[0].mxu0
        %v645 = vadd.f32 %v448, %v644
        %v646 = vpop.f32.mrb[0].mxu0
        %647 = vmatprep.mubr.f32.mxu0 0.0
        %648 = vmatmul.mubr.f32.gmra.mrb[0].mxu0 %v504
        %v649 = vpop.f32.mrb[0].mxu0
        %v650 = vadd.f32 %v453, %v649
        %v651 = vpop.f32.mrb[0].mxu0
        %652 = vmatprep.mubr.f32.mxu0 0.0
        %653 = vmatmul.mubr.f32.gmra.mrb[0].mxu0 %v507
        %v654 = vpop.f32.mrb[0].mxu0
        %v655 = vadd.f32 %v458, %v654
        %v656 = vpop.f32.mrb[0].mxu0
        %657 = vdwg.mxu0
        %v658 = vld [vmem:[%s3] sm:$0xff]
        %v659 = vld [vmem:[%s3 + $0x8] sm:$0xff]
        %v660 = vld [vmem:[%s3 + $0x10] sm:$0xff]
        %v661 = vld [vmem:[%s3 + $0x18] sm:$0xff]
        %v662 = vld [vmem:[%s3 + $0x20] sm:$0xff]
        %v663 = vld [vmem:[%s3 + $0x28] sm:$0xff]
        %v664 = vld [vmem:[%s3 + $0x30] sm:$0xff]
        %v665 = vld [vmem:[%s3 + $0x38] sm:$0xff]
        %v666 = vld [vmem:[%s3 + $0x40] sm:$0xff]
        %v667 = vld [vmem:[%s3 + $0x48] sm:$0xff]
        %v668 = vld [vmem:[%s3 + $0x50] sm:$0xff]
        %v669 = vld [vmem:[%s3 + $0x58] sm:$0xff]
        %v670 = vld [vmem:[%s3 + $0x60] sm:$0xff]
        %v671 = vld [vmem:[%s3 + $0x68] sm:$0xff]
        %v672 = vld [vmem:[%s3 + $0x70] sm:$0xff]
        %v673 = vld [vmem:[%s3 + $0x78] sm:$0xff]
        %v674 = vld [vmem:[%s4] sm:$0xff]
        %v675 = vld [vmem:[%s4 + $0x8] sm:$0xff]
        %v676 = vld [vmem:[%s4 + $0x10] sm:$0xff]
        %v677 = vld [vmem:[%s4 + $0x18] sm:$0xff]
        %v678 = vld [vmem:[%s4 + $0x20] sm:$0xff]
        %v679 = vld [vmem:[%s4 + $0x28] sm:$0xff]
        %v680 = vld [vmem:[%s4 + $0x30] sm:$0xff]
        %v681 = vld [vmem:[%s4 + $0x38] sm:$0xff]
        %v682 = vld [vmem:[%s4 + $0x40] sm:$0xff]
        %v683 = vld [vmem:[%s4 + $0x48] sm:$0xff]
        %v684 = vld [vmem:[%s4 + $0x50] sm:$0xff]
        %v685 = vld [vmem:[%s4 + $0x58] sm:$0xff]
        %v686 = vld [vmem:[%s4 + $0x60] sm:$0xff]
        %v687 = vld [vmem:[%s4 + $0x68] sm:$0xff]
        %v688 = vld [vmem:[%s4 + $0x70] sm:$0xff]
        %v689 = vld [vmem:[%s4 + $0x78] sm:$0xff]
        %691 = vset.pattern.permute.xlu0 0
        %692 = vperm.xlu0 %691, %v674
        %v693 = vpop.permute.xlu0 %692
        %696 = vset.pattern.permute.xlu0 0
        %697 = vperm.xlu0 %696, %v675
        %v698 = vpop.permute.xlu0 %697
        %701 = vset.pattern.permute.xlu0 0
        %702 = vperm.xlu0 %701, %v676
        %v703 = vpop.permute.xlu0 %702
        %706 = vset.pattern.permute.xlu0 0
        %707 = vperm.xlu0 %706, %v677
        %v708 = vpop.permute.xlu0 %707
        %711 = vset.pattern.permute.xlu0 0
        %712 = vperm.xlu0 %711, %v678
        %v713 = vpop.permute.xlu0 %712
        %716 = vset.pattern.permute.xlu0 0
        %717 = vperm.xlu0 %716, %v679
        %v718 = vpop.permute.xlu0 %717
        %721 = vset.pattern.permute.xlu0 0
        %722 = vperm.xlu0 %721, %v680
        %v723 = vpop.permute.xlu0 %722
        %726 = vset.pattern.permute.xlu0 0
        %727 = vperm.xlu0 %726, %v681
        %v728 = vpop.permute.xlu0 %727
        %731 = vset.pattern.permute.xlu0 0
        %732 = vperm.xlu0 %731, %v682
        %v733 = vpop.permute.xlu0 %732
        %736 = vset.pattern.permute.xlu0 0
        %737 = vperm.xlu0 %736, %v683
        %v738 = vpop.permute.xlu0 %737
        %741 = vset.pattern.permute.xlu0 0
        %742 = vperm.xlu0 %741, %v684
        %v743 = vpop.permute.xlu0 %742
        %746 = vset.pattern.permute.xlu0 0
        %747 = vperm.xlu0 %746, %v685
        %v748 = vpop.permute.xlu0 %747
        %751 = vset.pattern.permute.xlu0 0
        %752 = vperm.xlu0 %751, %v686
        %v753 = vpop.permute.xlu0 %752
        %756 = vset.pattern.permute.xlu0 0
        %757 = vperm.xlu0 %756, %v687
        %v758 = vpop.permute.xlu0 %757
        %761 = vset.pattern.permute.xlu0 0
        %762 = vperm.xlu0 %761, %v688
        %v763 = vpop.permute.xlu0 %762
        %766 = vset.pattern.permute.xlu0 0
        %767 = vperm.xlu0 %766, %v689
        %v768 = vpop.permute.xlu0 %767
        %v771 = vsel %vm460, %v658, 0
        %v774 = vsel %vm460, %v659, 0
        %v777 = vsel %vm460, %v660, 0
        %v780 = vsel %vm460, %v661, 0
        %v783 = vsel %vm460, %v662, 0
        %v786 = vsel %vm460, %v663, 0
        %v789 = vsel %vm460, %v664, 0
        %v792 = vsel %vm460, %v665, 0
        %v795 = vsel %vm460, %v666, 0
        %v798 = vsel %vm460, %v667, 0
        %v801 = vsel %vm460, %v668, 0
        %v804 = vsel %vm460, %v669, 0
        %v807 = vsel %vm460, %v670, 0
        %v810 = vsel %vm460, %v671, 0
        %v813 = vsel %vm460, %v672, 0
        %v816 = vsel %vm460, %v673, 0
        %v819 = vsel %vm509, %v343, 0
        %821 = vmatprep.subr.mxu0 0.0
        %822 = vmatpush1.msra.mxu0 %v819
        %823 = vmatprep.subr.mxu0 0.0
        %824 = vmatpush1.msra.mxu0 0.0
        %825 = vmatprep.subr.mxu0 0.0
        %826 = vmatpush1.msra.mxu0 0.0
        %827 = vmatprep.subr.mxu0 0.0
        %828 = vmatpush1.msra.mxu0 0.0
        %829 = vmatprep.subr.mxu0 0.0
        %830 = vmatpush1.msra.mxu0 0.0
        %831 = vmatprep.subr.mxu0 0.0
        %832 = vmatpush1.msra.mxu0 0.0
        %833 = vmatprep.subr.mxu0 0.0
        %834 = vmatpush1.msra.mxu0 0.0
        %835 = vmatprep.subr.mxu0 0.0
        %836 = vmatpush1.msra.mxu0 0.0
        %837 = vmatprep.subr.mxu0 0.0
        %838 = vmatpush1.msra.mxu0 0.0
        %839 = vmatprep.subr.mxu0 0.0
        %840 = vmatpush1.msra.mxu0 0.0
        %841 = vmatprep.subr.mxu0 0.0
        %842 = vmatpush1.msra.mxu0 0.0
        %843 = vmatprep.subr.mxu0 0.0
        %844 = vmatpush1.msra.mxu0 0.0
        %845 = vmatprep.subr.mxu0 0.0
        %846 = vmatpush1.msra.mxu0 0.0
        %847 = vmatprep.subr.mxu0 0.0
        %848 = vmatpush1.msra.mxu0 0.0
        %849 = vmatprep.subr.mxu0 0.0
        %850 = vmatpush1.msra.mxu0 0.0
        %851 = vmatprep.subr.mxu0 0.0
        %852 = vmatpush1.msra.mxu0 0.0
        %853 = vmatprep.subr.mxu0 0.0
        %854 = vmatpush1.msra.mxu0 0.0
        %855 = vmatprep.subr.mxu0 0.0
        %856 = vmatpush1.msra.mxu0 0.0
        %857 = vmatprep.subr.mxu0 0.0
        %858 = vmatpush1.msra.mxu0 0.0
        %859 = vmatprep.subr.mxu0 0.0
        %860 = vmatpush1.msra.mxu0 0.0
        %861 = vmatprep.subr.mxu0 0.0
        %862 = vmatpush1.msra.mxu0 0.0
        %863 = vmatprep.subr.mxu0 0.0
        %864 = vmatpush1.msra.mxu0 0.0
        %865 = vmatprep.subr.mxu0 0.0
        %866 = vmatpush1.msra.mxu0 0.0
        %867 = vmatprep.subr.mxu0 0.0
        %868 = vmatpush1.msra.mxu0 0.0
        %869 = vmatprep.subr.mxu0 0.0
        %870 = vmatpush1.msra.mxu0 0.0
        %871 = vmatprep.subr.mxu0 0.0
        %872 = vmatpush1.msra.mxu0 0.0
        %873 = vmatprep.subr.mxu0 0.0
        %874 = vmatpush1.msra.mxu0 0.0
        %875 = vmatprep.subr.mxu0 0.0
        %876 = vmatpush1.msra.mxu0 0.0
        %877 = vmatprep.subr.mxu0 0.0
        %878 = vmatpush1.msra.mxu0 0.0
        %879 = vmatprep.subr.mxu0 0.0
        %880 = vmatpush1.msra.mxu0 0.0
        %881 = vmatprep.subr.mxu0 0.0
        %882 = vmatpush1.msra.mxu0 0.0
        %883 = vmatprep.subr.mxu0 0.0
        %884 = vmatpush1.msra.mxu0 0.0
        %885 = vmatprep.mubr.f32.mxu0 0.0
        %886 = vmatmul.mubr.f32.gmra.mrb[0].mxu0 %v771
        %v887 = vpop.f32.mrb[0].mxu0
        %v888 = vadd.f32 %v693, %v887
        %v889 = vpop.f32.mrb[0].mxu0
        %890 = vmatprep.mubr.f32.mxu0 0.0
        %891 = vmatmul.mubr.f32.gmra.mrb[0].mxu0 %v774
        %v892 = vpop.f32.mrb[0].mxu0
        %v893 = vadd.f32 %v698, %v892
        %v894 = vpop.f32.mrb[0].mxu0
        %895 = vmatprep.mubr.f32.mxu0 0.0
        %896 = vmatmul.mubr.f32.gmra.mrb[0].mxu0 %v777
        %v897 = vpop.f32.mrb[0].mxu0
        %v898 = vadd.f32 %v703, %v897
        %v899 = vpop.f32.mrb[0].mxu0
        %900 = vmatprep.mubr.f32.mxu0 0.0
        %901 = vmatmul.mubr.f32.gmra.mrb[0].mxu0 %v780
        %v902 = vpop.f32.mrb[0].mxu0
        %v903 = vadd.f32 %v708, %v902
        %v904 = vpop.f32.mrb[0].mxu0
        %905 = vmatprep.mubr.f32.mxu0 0.0
        %906 = vmatmul.mubr.f32.gmra.mrb[0].mxu0 %v783
        %v907 = vpop.f32.mrb[0].mxu0
        %v908 = vadd.f32 %v713, %v907
        %v909 = vpop.f32.mrb[0].mxu0
        %910 = vmatprep.mubr.f32.mxu0 0.0
        %911 = vmatmul.mubr.f32.gmra.mrb[0].mxu0 %v786
        %v912 = vpop.f32.mrb[0].mxu0
        %v913 = vadd.f32 %v718, %v912
        %v914 = vpop.f32.mrb[0].mxu0
        %915 = vmatprep.mubr.f32.mxu0 0.0
        %916 = vmatmul.mubr.f32.gmra.mrb[0].mxu0 %v789
        %v917 = vpop.f32.mrb[0].mxu0
        %v918 = vadd.f32 %v723, %v917
        %v919 = vpop.f32.mrb[0].mxu0
        %920 = vmatprep.mubr.f32.mxu0 0.0
        %921 = vmatmul.mubr.f32.gmra.mrb[0].mxu0 %v792
        %v922 = vpop.f32.mrb[0].mxu0
        %v923 = vadd.f32 %v728, %v922
        %v924 = vpop.f32.mrb[0].mxu0
        %925 = vmatprep.mubr.f32.mxu0 0.0
        %926 = vmatmul.mubr.f32.gmra.mrb[0].mxu0 %v795
        %v927 = vpop.f32.mrb[0].mxu0
        %v928 = vadd.f32 %v733, %v927
        %v929 = vpop.f32.mrb[0].mxu0
        %930 = vmatprep.mubr.f32.mxu0 0.0
        %931 = vmatmul.mubr.f32.gmra.mrb[0].mxu0 %v798
        %v932 = vpop.f32.mrb[0].mxu0
        %v933 = vadd.f32 %v738, %v932
        %v934 = vpop.f32.mrb[0].mxu0
        %935 = vmatprep.mubr.f32.mxu0 0.0
        %936 = vmatmul.mubr.f32.gmra.mrb[0].mxu0 %v801
        %v937 = vpop.f32.mrb[0].mxu0
        %v938 = vadd.f32 %v743, %v937
        %v939 = vpop.f32.mrb[0].mxu0
        %940 = vmatprep.mubr.f32.mxu0 0.0
        %941 = vmatmul.mubr.f32.gmra.mrb[0].mxu0 %v804
        %v942 = vpop.f32.mrb[0].mxu0
        %v943 = vadd.f32 %v748, %v942
        %v944 = vpop.f32.mrb[0].mxu0
        %945 = vmatprep.mubr.f32.mxu0 0.0
        %946 = vmatmul.mubr.f32.gmra.mrb[0].mxu0 %v807
        %v947 = vpop.f32.mrb[0].mxu0
        %v948 = vadd.f32 %v753, %v947
        %v949 = vpop.f32.mrb[0].mxu0
        %950 = vmatprep.mubr.f32.mxu0 0.0
        %951 = vmatmul.mubr.f32.gmra.mrb[0].mxu0 %v810
        %v952 = vpop.f32.mrb[0].mxu0
        %v953 = vadd.f32 %v758, %v952
        %v954 = vpop.f32.mrb[0].mxu0
        %955 = vmatprep.mubr.f32.mxu0 0.0
        %956 = vmatmul.mubr.f32.gmra.mrb[0].mxu0 %v813
        %v957 = vpop.f32.mrb[0].mxu0
        %v958 = vadd.f32 %v763, %v957
        %v959 = vpop.f32.mrb[0].mxu0
        %960 = vmatprep.mubr.f32.mxu0 0.0
        %961 = vmatmul.mubr.f32.gmra.mrb[0].mxu0 %v816
        %v962 = vpop.f32.mrb[0].mxu0
        %v963 = vadd.f32 %v768, %v962
        %v964 = vpop.f32.mrb[0].mxu0
        %965 = vdwg.mxu0
        %v966 = vld [vmem:[%s5] sm:$0xff]
        %v967 = vld [vmem:[%s5 + $0x8] sm:$0xff]
        %v968 = vld [vmem:[%s5 + $0x10] sm:$0xff]
        %v969 = vld [vmem:[%s5 + $0x18] sm:$0xff]
        %v970 = vld [vmem:[%s5 + $0x20] sm:$0xff]
        %v971 = vld [vmem:[%s5 + $0x28] sm:$0xff]
        %v972 = vld [vmem:[%s5 + $0x30] sm:$0xff]
        %v973 = vld [vmem:[%s5 + $0x38] sm:$0xff]
        %v974 = vld [vmem:[%s5 + $0x40] sm:$0xff]
        %v975 = vld [vmem:[%s5 + $0x48] sm:$0xff]
        %v976 = vld [vmem:[%s5 + $0x50] sm:$0xff]
        %v977 = vld [vmem:[%s5 + $0x58] sm:$0xff]
        %v978 = vld [vmem:[%s5 + $0x60] sm:$0xff]
        %v979 = vld [vmem:[%s5 + $0x68] sm:$0xff]
        %v980 = vld [vmem:[%s5 + $0x70] sm:$0xff]
        %v981 = vld [vmem:[%s5 + $0x78] sm:$0xff]
        %v982 = vld [vmem:[%s6] sm:$0xff]
        %v983 = vld [vmem:[%s6 + $0x8] sm:$0xff]
        %v984 = vld [vmem:[%s6 + $0x10] sm:$0xff]
        %v985 = vld [vmem:[%s6 + $0x18] sm:$0xff]
        %v986 = vld [vmem:[%s6 + $0x20] sm:$0xff]
        %v987 = vld [vmem:[%s6 + $0x28] sm:$0xff]
        %v988 = vld [vmem:[%s6 + $0x30] sm:$0xff]
        %v989 = vld [vmem:[%s6 + $0x38] sm:$0xff]
        %v990 = vld [vmem:[%s6 + $0x40] sm:$0xff]
        %v991 = vld [vmem:[%s6 + $0x48] sm:$0xff]
        %v992 = vld [vmem:[%s6 + $0x50] sm:$0xff]
        %v993 = vld [vmem:[%s6 + $0x58] sm:$0xff]
        %v994 = vld [vmem:[%s6 + $0x60] sm:$0xff]
        %v995 = vld [vmem:[%s6 + $0x68] sm:$0xff]
        %v996 = vld [vmem:[%s6 + $0x70] sm:$0xff]
        %v997 = vld [vmem:[%s6 + $0x78] sm:$0xff]
        %999 = vset.pattern.permute.xlu0 0
        %1000 = vperm.xlu0 %999, %v982
        %v1001 = vpop.permute.xlu0 %1000
        %1004 = vset.pattern.permute.xlu0 0
        %1005 = vperm.xlu0 %1004, %v983
        %v1006 = vpop.permute.xlu0 %1005
        %1009 = vset.pattern.permute.xlu0 0
        %1010 = vperm.xlu0 %1009, %v984
        %v1011 = vpop.permute.xlu0 %1010
        %1014 = vset.pattern.permute.xlu0 0
        %1015 = vperm.xlu0 %1014, %v985
        %v1016 = vpop.permute.xlu0 %1015
        %1019 = vset.pattern.permute.xlu0 0
        %1020 = vperm.xlu0 %1019, %v986
        %v1021 = vpop.permute.xlu0 %1020
        %1024 = vset.pattern.permute.xlu0 0
        %1025 = vperm.xlu0 %1024, %v987
        %v1026 = vpop.permute.xlu0 %1025
        %1029 = vset.pattern.permute.xlu0 0
        %1030 = vperm.xlu0 %1029, %v988
        %v1031 = vpop.permute.xlu0 %1030
        %1034 = vset.pattern.permute.xlu0 0
        %1035 = vperm.xlu0 %1034, %v989
        %v1036 = vpop.permute.xlu0 %1035
        %1039 = vset.pattern.permute.xlu0 0
        %1040 = vperm.xlu0 %1039, %v990
        %v1041 = vpop.permute.xlu0 %1040
        %1044 = vset.pattern.permute.xlu0 0
        %1045 = vperm.xlu0 %1044, %v991
        %v1046 = vpop.permute.xlu0 %1045
        %1049 = vset.pattern.permute.xlu0 0
        %1050 = vperm.xlu0 %1049, %v992
        %v1051 = vpop.permute.xlu0 %1050
        %1054 = vset.pattern.permute.xlu0 0
        %1055 = vperm.xlu0 %1054, %v993
        %v1056 = vpop.permute.xlu0 %1055
        %1059 = vset.pattern.permute.xlu0 0
        %1060 = vperm.xlu0 %1059, %v994
        %v1061 = vpop.permute.xlu0 %1060
        %1064 = vset.pattern.permute.xlu0 0
        %1065 = vperm.xlu0 %1064, %v995
        %v1066 = vpop.permute.xlu0 %1065
        %1069 = vset.pattern.permute.xlu0 0
        %1070 = vperm.xlu0 %1069, %v996
        %v1071 = vpop.permute.xlu0 %1070
        %1074 = vset.pattern.permute.xlu0 0
        %1075 = vperm.xlu0 %1074, %v997
        %v1076 = vpop.permute.xlu0 %1075
        %v1079 = vsel %vm460, %v966, 0
        %v1082 = vsel %vm460, %v967, 0
        %v1085 = vsel %vm460, %v968, 0
        %v1088 = vsel %vm460, %v969, 0
        %v1091 = vsel %vm460, %v970, 0
        %v1094 = vsel %vm460, %v971, 0
        %v1097 = vsel %vm460, %v972, 0
        %v1100 = vsel %vm460, %v973, 0
        %v1103 = vsel %vm460, %v974, 0
        %v1106 = vsel %vm460, %v975, 0
        %v1109 = vsel %vm460, %v976, 0
        %v1112 = vsel %vm460, %v977, 0
        %v1115 = vsel %vm460, %v978, 0
        %v1118 = vsel %vm460, %v979, 0
        %v1121 = vsel %vm460, %v980, 0
        %v1124 = vsel %vm460, %v981, 0
        %1126 = vmatprep.subr.mxu0 0.0
        %1127 = vmatpush1.msra.mxu0 %v819
        %1128 = vmatprep.subr.mxu0 0.0
        %1129 = vmatpush1.msra.mxu0 0.0
        %1130 = vmatprep.subr.mxu0 0.0
        %1131 = vmatpush1.msra.mxu0 0.0
        %1132 = vmatprep.subr.mxu0 0.0
        %1133 = vmatpush1.msra.mxu0 0.0
        %1134 = vmatprep.subr.mxu0 0.0
        %1135 = vmatpush1.msra.mxu0 0.0
        %1136 = vmatprep.subr.mxu0 0.0
        %1137 = vmatpush1.msra.mxu0 0.0
        %1138 = vmatprep.subr.mxu0 0.0
        %1139 = vmatpush1.msra.mxu0 0.0
        %1140 = vmatprep.subr.mxu0 0.0
        %1141 = vmatpush1.msra.mxu0 0.0
        %1142 = vmatprep.subr.mxu0 0.0
        %1143 = vmatpush1.msra.mxu0 0.0
        %1144 = vmatprep.subr.mxu0 0.0
        %1145 = vmatpush1.msra.mxu0 0.0
        %1146 = vmatprep.subr.mxu0 0.0
        %1147 = vmatpush1.msra.mxu0 0.0
        %1148 = vmatprep.subr.mxu0 0.0
        %1149 = vmatpush1.msra.mxu0 0.0
        %1150 = vmatprep.subr.mxu0 0.0
        %1151 = vmatpush1.msra.mxu0 0.0
        %1152 = vmatprep.subr.mxu0 0.0
        %1153 = vmatpush1.msra.mxu0 0.0
        %1154 = vmatprep.subr.mxu0 0.0
        %1155 = vmatpush1.msra.mxu0 0.0
        %1156 = vmatprep.subr.mxu0 0.0
        %1157 = vmatpush1.msra.mxu0 0.0
        %1158 = vmatprep.subr.mxu0 0.0
        %1159 = vmatpush1.msra.mxu0 0.0
        %1160 = vmatprep.subr.mxu0 0.0
        %1161 = vmatpush1.msra.mxu0 0.0
        %1162 = vmatprep.subr.mxu0 0.0
        %1163 = vmatpush1.msra.mxu0 0.0
        %1164 = vmatprep.subr.mxu0 0.0
        %1165 = vmatpush1.msra.mxu0 0.0
        %1166 = vmatprep.subr.mxu0 0.0
        %1167 = vmatpush1.msra.mxu0 0.0
        %1168 = vmatprep.subr.mxu0 0.0
        %1169 = vmatpush1.msra.mxu0 0.0
        %1170 = vmatprep.subr.mxu0 0.0
        %1171 = vmatpush1.msra.mxu0 0.0
        %1172 = vmatprep.subr.mxu0 0.0
        %1173 = vmatpush1.msra.mxu0 0.0
        %1174 = vmatprep.subr.mxu0 0.0
        %1175 = vmatpush1.msra.mxu0 0.0
        %1176 = vmatprep.subr.mxu0 0.0
        %1177 = vmatpush1.msra.mxu0 0.0
        %1178 = vmatprep.subr.mxu0 0.0
        %1179 = vmatpush1.msra.mxu0 0.0
        %1180 = vmatprep.subr.mxu0 0.0
        %1181 = vmatpush1.msra.mxu0 0.0
        %1182 = vmatprep.subr.mxu0 0.0
        %1183 = vmatpush1.msra.mxu0 0.0
        %1184 = vmatprep.subr.mxu0 0.0
        %1185 = vmatpush1.msra.mxu0 0.0
        %1186 = vmatprep.subr.mxu0 0.0
        %1187 = vmatpush1.msra.mxu0 0.0
        %1188 = vmatprep.subr.mxu0 0.0
        %1189 = vmatpush1.msra.mxu0 0.0
        %1190 = vmatprep.mubr.f32.mxu0 0.0
        %1191 = vmatmul.mubr.f32.gmra.mrb[0].mxu0 %v1079
        %v1192 = vpop.f32.mrb[0].mxu0
        %v1193 = vadd.f32 %v1001, %v1192
        %v1194 = vpop.f32.mrb[0].mxu0
        %1195 = vmatprep.mubr.f32.mxu0 0.0
        %1196 = vmatmul.mubr.f32.gmra.mrb[0].mxu0 %v1082
        %v1197 = vpop.f32.mrb[0].mxu0
        %v1198 = vadd.f32 %v1006, %v1197
        %v1199 = vpop.f32.mrb[0].mxu0
        %1200 = vmatprep.mubr.f32.mxu0 0.0
        %1201 = vmatmul.mubr.f32.gmra.mrb[0].mxu0 %v1085
        %v1202 = vpop.f32.mrb[0].mxu0
        %v1203 = vadd.f32 %v1011, %v1202
        %v1204 = vpop.f32.mrb[0].mxu0
        %1205 = vmatprep.mubr.f32.mxu0 0.0
        %1206 = vmatmul.mubr.f32.gmra.mrb[0].mxu0 %v1088
        %v1207 = vpop.f32.mrb[0].mxu0
        %v1208 = vadd.f32 %v1016, %v1207
        %v1209 = vpop.f32.mrb[0].mxu0
        %1210 = vmatprep.mubr.f32.mxu0 0.0
        %1211 = vmatmul.mubr.f32.gmra.mrb[0].mxu0 %v1091
        %v1212 = vpop.f32.mrb[0].mxu0
        %v1213 = vadd.f32 %v1021, %v1212
        %v1214 = vpop.f32.mrb[0].mxu0
        %1215 = vmatprep.mubr.f32.mxu0 0.0
        %1216 = vmatmul.mubr.f32.gmra.mrb[0].mxu0 %v1094
        %v1217 = vpop.f32.mrb[0].mxu0
        %v1218 = vadd.f32 %v1026, %v1217
        %v1219 = vpop.f32.mrb[0].mxu0
        %1220 = vmatprep.mubr.f32.mxu0 0.0
        %1221 = vmatmul.mubr.f32.gmra.mrb[0].mxu0 %v1097
        %v1222 = vpop.f32.mrb[0].mxu0
        %v1223 = vadd.f32 %v1031, %v1222
        %v1224 = vpop.f32.mrb[0].mxu0
        %1225 = vmatprep.mubr.f32.mxu0 0.0
        %1226 = vmatmul.mubr.f32.gmra.mrb[0].mxu0 %v1100
        %v1227 = vpop.f32.mrb[0].mxu0
        %v1228 = vadd.f32 %v1036, %v1227
        %v1229 = vpop.f32.mrb[0].mxu0
        %1230 = vmatprep.mubr.f32.mxu0 0.0
        %1231 = vmatmul.mubr.f32.gmra.mrb[0].mxu0 %v1103
        %v1232 = vpop.f32.mrb[0].mxu0
        %v1233 = vadd.f32 %v1041, %v1232
        %v1234 = vpop.f32.mrb[0].mxu0
        %1235 = vmatprep.mubr.f32.mxu0 0.0
        %1236 = vmatmul.mubr.f32.gmra.mrb[0].mxu0 %v1106
        %v1237 = vpop.f32.mrb[0].mxu0
        %v1238 = vadd.f32 %v1046, %v1237
        %v1239 = vpop.f32.mrb[0].mxu0
        %1240 = vmatprep.mubr.f32.mxu0 0.0
        %1241 = vmatmul.mubr.f32.gmra.mrb[0].mxu0 %v1109
        %v1242 = vpop.f32.mrb[0].mxu0
        %v1243 = vadd.f32 %v1051, %v1242
        %v1244 = vpop.f32.mrb[0].mxu0
        %1245 = vmatprep.mubr.f32.mxu0 0.0
        %1246 = vmatmul.mubr.f32.gmra.mrb[0].mxu0 %v1112
        %v1247 = vpop.f32.mrb[0].mxu0
        %v1248 = vadd.f32 %v1056, %v1247
        %v1249 = vpop.f32.mrb[0].mxu0
        %1250 = vmatprep.mubr.f32.mxu0 0.0
        %1251 = vmatmul.mubr.f32.gmra.mrb[0].mxu0 %v1115
        %v1252 = vpop.f32.mrb[0].mxu0
        %v1253 = vadd.f32 %v1061, %v1252
        %v1254 = vpop.f32.mrb[0].mxu0
        %1255 = vmatprep.mubr.f32.mxu0 0.0
        %1256 = vmatmul.mubr.f32.gmra.mrb[0].mxu0 %v1118
        %v1257 = vpop.f32.mrb[0].mxu0
        %v1258 = vadd.f32 %v1066, %v1257
        %v1259 = vpop.f32.mrb[0].mxu0
        %1260 = vmatprep.mubr.f32.mxu0 0.0
        %1261 = vmatmul.mubr.f32.gmra.mrb[0].mxu0 %v1121
        %v1262 = vpop.f32.mrb[0].mxu0
        %v1263 = vadd.f32 %v1071, %v1262
        %v1264 = vpop.f32.mrb[0].mxu0
        %1265 = vmatprep.mubr.f32.mxu0 0.0
        %1266 = vmatmul.mubr.f32.gmra.mrb[0].mxu0 %v1124
        %v1267 = vpop.f32.mrb[0].mxu0
        %v1268 = vadd.f32 %v1076, %v1267
        %v1269 = vpop.f32.mrb[0].mxu0
        %1270 = vdwg.mxu0
        %1271 = vxpose.xlu0.b32.start [1/16] %v580, 128
        %1272 = vxpose.xlu0.b32.cont [2/16] %v585, 128
        %1273 = vxpose.xlu0.b32.cont [3/16] %v590, 128
        %1274 = vxpose.xlu0.b32.cont [4/16] %v595, 128
        %1275 = vxpose.xlu0.b32.cont [5/16] %v600, 128
        %1276 = vxpose.xlu0.b32.cont [6/16] %v605, 128
        %1277 = vxpose.xlu0.b32.cont [7/16] %v610, 128
        %1278 = vxpose.xlu0.b32.cont [8/16] %v615, 128
        %1279 = vxpose.xlu0.b32.cont [9/16] %v620, 128
        %1280 = vxpose.xlu0.b32.cont [10/16] %v625, 128
        %1281 = vxpose.xlu0.b32.cont [11/16] %v630, 128
        %1282 = vxpose.xlu0.b32.cont [12/16] %v635, 128
        %1283 = vxpose.xlu0.b32.cont [13/16] %v640, 128
        %1284 = vxpose.xlu0.b32.cont [14/16] %v645, 128
        %1285 = vxpose.xlu0.b32.cont [15/16] %v650, 128
        %1286 = vxpose.xlu0.b32.end [16/16] %v655, 128
        %v1287 = vpop.trf.xlu0
        %v1288 = vpop.trf.xlu0
        %v1289 = vpop.trf.xlu0
        %v1290 = vpop.trf.xlu0
        %v1291 = vpop.trf.xlu0
        %v1292 = vpop.trf.xlu0
        %v1293 = vpop.trf.xlu0
        %v1294 = vpop.trf.xlu0
        %v1295 = vpop.trf.xlu0
        %v1296 = vpop.trf.xlu0
        %v1297 = vpop.trf.xlu0
        %v1298 = vpop.trf.xlu0
        %v1299 = vpop.trf.xlu0
        %v1300 = vpop.trf.xlu0
        %v1301 = vpop.trf.xlu0
        %v1302 = vpop.trf.xlu0
        %1303 = vmatprep.subr.mxu0 0.0
        %1304 = vmatpush1.msra.mxu0 %v888
        %1305 = vmatprep.subr.mxu0 0.0
        %1306 = vmatpush1.msra.mxu0 %v893
        %1307 = vmatprep.subr.mxu0 0.0
        %1308 = vmatpush1.msra.mxu0 %v898
        %1309 = vmatprep.subr.mxu0 0.0
        %1310 = vmatpush1.msra.mxu0 %v903
        %1311 = vmatprep.subr.mxu0 0.0
        %1312 = vmatpush1.msra.mxu0 %v908
        %1313 = vmatprep.subr.mxu0 0.0
        %1314 = vmatpush1.msra.mxu0 %v913
        %1315 = vmatprep.subr.mxu0 0.0
        %1316 = vmatpush1.msra.mxu0 %v918
        %1317 = vmatprep.subr.mxu0 0.0
        %1318 = vmatpush1.msra.mxu0 %v923
        %1319 = vmatprep.subr.mxu0 0.0
        %1320 = vmatpush1.msra.mxu0 %v928
        %1321 = vmatprep.subr.mxu0 0.0
        %1322 = vmatpush1.msra.mxu0 %v933
        %1323 = vmatprep.subr.mxu0 0.0
        %1324 = vmatpush1.msra.mxu0 %v938
        %1325 = vmatprep.subr.mxu0 0.0
        %1326 = vmatpush1.msra.mxu0 %v943
        %1327 = vmatprep.subr.mxu0 0.0
        %1328 = vmatpush1.msra.mxu0 %v948
        %1329 = vmatprep.subr.mxu0 0.0
        %1330 = vmatpush1.msra.mxu0 %v953
        %1331 = vmatprep.subr.mxu0 0.0
        %1332 = vmatpush1.msra.mxu0 %v958
        %1333 = vmatprep.subr.mxu0 0.0
        %1334 = vmatpush1.msra.mxu0 %v963
        %1335 = vmatprep.subr.mxu0 0.0
        %1336 = vmatpush1.msra.mxu0 0.0
        %1337 = vmatprep.subr.mxu0 0.0
        %1338 = vmatpush1.msra.mxu0 0.0
        %1339 = vmatprep.subr.mxu0 0.0
        %1340 = vmatpush1.msra.mxu0 0.0
        %1341 = vmatprep.subr.mxu0 0.0
        %1342 = vmatpush1.msra.mxu0 0.0
        %1343 = vmatprep.subr.mxu0 0.0
        %1344 = vmatpush1.msra.mxu0 0.0
        %1345 = vmatprep.subr.mxu0 0.0
        %1346 = vmatpush1.msra.mxu0 0.0
        %1347 = vmatprep.subr.mxu0 0.0
        %1348 = vmatpush1.msra.mxu0 0.0
        %1349 = vmatprep.subr.mxu0 0.0
        %1350 = vmatpush1.msra.mxu0 0.0
        %1351 = vmatprep.subr.mxu0 0.0
        %1352 = vmatpush1.msra.mxu0 0.0
        %1353 = vmatprep.subr.mxu0 0.0
        %1354 = vmatpush1.msra.mxu0 0.0
        %1355 = vmatprep.subr.mxu0 0.0
        %1356 = vmatpush1.msra.mxu0 0.0
        %1357 = vmatprep.subr.mxu0 0.0
        %1358 = vmatpush1.msra.mxu0 0.0
        %1359 = vmatprep.subr.mxu0 0.0
        %1360 = vmatpush1.msra.mxu0 0.0
        %1361 = vmatprep.subr.mxu0 0.0
        %1362 = vmatpush1.msra.mxu0 0.0
        %1363 = vmatprep.subr.mxu0 0.0
        %1364 = vmatpush1.msra.mxu0 0.0
        %1365 = vmatprep.subr.mxu0 0.0
        %1366 = vmatpush1.msra.mxu0 0.0
        %1367 = vmatprep.mubr.f32.mxu0 0.0
        %1368 = vmatmul.mubr.f32.gmra.mrb[0].mxu0 %v1287
        %v1369 = vpop.f32.mrb[0].mxu0
        %v1370 = vadd.f32 0.0, %v1369
        %v1371 = vpop.f32.mrb[0].mxu0
        %1372 = vmatprep.mubr.f32.mxu0 0.0
        %1373 = vmatmul.mubr.f32.gmra.mrb[0].mxu0 %v1288
        %v1374 = vpop.f32.mrb[0].mxu0
        %v1375 = vadd.f32 0.0, %v1374
        %v1376 = vpop.f32.mrb[0].mxu0
        %1377 = vmatprep.mubr.f32.mxu0 0.0
        %1378 = vmatmul.mubr.f32.gmra.mrb[0].mxu0 %v1289
        %v1379 = vpop.f32.mrb[0].mxu0
        %v1380 = vadd.f32 0.0, %v1379
        %v1381 = vpop.f32.mrb[0].mxu0
        %1382 = vmatprep.mubr.f32.mxu0 0.0
        %1383 = vmatmul.mubr.f32.gmra.mrb[0].mxu0 %v1290
        %v1384 = vpop.f32.mrb[0].mxu0
        %v1385 = vadd.f32 0.0, %v1384
        %v1386 = vpop.f32.mrb[0].mxu0
        %1387 = vmatprep.mubr.f32.mxu0 0.0
        %1388 = vmatmul.mubr.f32.gmra.mrb[0].mxu0 %v1291
        %v1389 = vpop.f32.mrb[0].mxu0
        %v1390 = vadd.f32 0.0, %v1389
        %v1391 = vpop.f32.mrb[0].mxu0
        %1392 = vmatprep.mubr.f32.mxu0 0.0
        %1393 = vmatmul.mubr.f32.gmra.mrb[0].mxu0 %v1292
        %v1394 = vpop.f32.mrb[0].mxu0
        %v1395 = vadd.f32 0.0, %v1394
        %v1396 = vpop.f32.mrb[0].mxu0
        %1397 = vmatprep.mubr.f32.mxu0 0.0
        %1398 = vmatmul.mubr.f32.gmra.mrb[0].mxu0 %v1293
        %v1399 = vpop.f32.mrb[0].mxu0
        %v1400 = vadd.f32 0.0, %v1399
        %v1401 = vpop.f32.mrb[0].mxu0
        %1402 = vmatprep.mubr.f32.mxu0 0.0
        %1403 = vmatmul.mubr.f32.gmra.mrb[0].mxu0 %v1294
        %v1404 = vpop.f32.mrb[0].mxu0
        %v1405 = vadd.f32 0.0, %v1404
        %v1406 = vpop.f32.mrb[0].mxu0
        %1407 = vmatprep.mubr.f32.mxu0 0.0
        %1408 = vmatmul.mubr.f32.gmra.mrb[0].mxu0 %v1295
        %v1409 = vpop.f32.mrb[0].mxu0
        %v1410 = vadd.f32 0.0, %v1409
        %v1411 = vpop.f32.mrb[0].mxu0
        %1412 = vmatprep.mubr.f32.mxu0 0.0
        %1413 = vmatmul.mubr.f32.gmra.mrb[0].mxu0 %v1296
        %v1414 = vpop.f32.mrb[0].mxu0
        %v1415 = vadd.f32 0.0, %v1414
        %v1416 = vpop.f32.mrb[0].mxu0
        %1417 = vmatprep.mubr.f32.mxu0 0.0
        %1418 = vmatmul.mubr.f32.gmra.mrb[0].mxu0 %v1297
        %v1419 = vpop.f32.mrb[0].mxu0
        %v1420 = vadd.f32 0.0, %v1419
        %v1421 = vpop.f32.mrb[0].mxu0
        %1422 = vmatprep.mubr.f32.mxu0 0.0
        %1423 = vmatmul.mubr.f32.gmra.mrb[0].mxu0 %v1298
        %v1424 = vpop.f32.mrb[0].mxu0
        %v1425 = vadd.f32 0.0, %v1424
        %v1426 = vpop.f32.mrb[0].mxu0
        %1427 = vmatprep.mubr.f32.mxu0 0.0
        %1428 = vmatmul.mubr.f32.gmra.mrb[0].mxu0 %v1299
        %v1429 = vpop.f32.mrb[0].mxu0
        %v1430 = vadd.f32 0.0, %v1429
        %v1431 = vpop.f32.mrb[0].mxu0
        %1432 = vmatprep.mubr.f32.mxu0 0.0
        %1433 = vmatmul.mubr.f32.gmra.mrb[0].mxu0 %v1300
        %v1434 = vpop.f32.mrb[0].mxu0
        %v1435 = vadd.f32 0.0, %v1434
        %v1436 = vpop.f32.mrb[0].mxu0
        %1437 = vmatprep.mubr.f32.mxu0 0.0
        %1438 = vmatmul.mubr.f32.gmra.mrb[0].mxu0 %v1301
        %v1439 = vpop.f32.mrb[0].mxu0
        %v1440 = vadd.f32 0.0, %v1439
        %v1441 = vpop.f32.mrb[0].mxu0
        %1442 = vmatprep.mubr.f32.mxu0 0.0
        %1443 = vmatmul.mubr.f32.gmra.mrb[0].mxu0 %v1302
        %v1444 = vpop.f32.mrb[0].mxu0
        %v1445 = vadd.f32 0.0, %v1444
        %v1446 = vpop.f32.mrb[0].mxu0
        %1447 = vdwg.mxu0
        %1448 = vmax.xlane.f32.xlu0 %v1370
        %v1449 = vpop.xlane.xlu0 %1448
        %1450 = vmax.xlane.f32.xlu0 %v1375
        %v1451 = vpop.xlane.xlu0 %1450
        %1452 = vmax.xlane.f32.xlu0 %v1380
        %v1453 = vpop.xlane.xlu0 %1452
        %1454 = vmax.xlane.f32.xlu0 %v1385
        %v1455 = vpop.xlane.xlu0 %1454
        %1456 = vmax.xlane.f32.xlu0 %v1390
        %v1457 = vpop.xlane.xlu0 %1456
        %1458 = vmax.xlane.f32.xlu0 %v1395
        %v1459 = vpop.xlane.xlu0 %1458
        %1460 = vmax.xlane.f32.xlu0 %v1400
        %v1461 = vpop.xlane.xlu0 %1460
        %1462 = vmax.xlane.f32.xlu0 %v1405
        %v1463 = vpop.xlane.xlu0 %1462
        %1464 = vmax.xlane.f32.xlu0 %v1410
        %v1465 = vpop.xlane.xlu0 %1464
        %1466 = vmax.xlane.f32.xlu0 %v1415
        %v1467 = vpop.xlane.xlu0 %1466
        %1468 = vmax.xlane.f32.xlu0 %v1420
        %v1469 = vpop.xlane.xlu0 %1468
        %1470 = vmax.xlane.f32.xlu0 %v1425
        %v1471 = vpop.xlane.xlu0 %1470
        %1472 = vmax.xlane.f32.xlu0 %v1430
        %v1473 = vpop.xlane.xlu0 %1472
        %1474 = vmax.xlane.f32.xlu0 %v1435
        %v1475 = vpop.xlane.xlu0 %1474
        %1476 = vmax.xlane.f32.xlu0 %v1440
        %v1477 = vpop.xlane.xlu0 %1476
        %1478 = vmax.xlane.f32.xlu0 %v1445
        %v1479 = vpop.xlane.xlu0 %1478
        %v1480 = vsub.f32 %v1370, %v1449
        %v1481 = vsub.f32 %v1375, %v1451
        %v1482 = vsub.f32 %v1380, %v1453
        %v1483 = vsub.f32 %v1385, %v1455
        %v1484 = vsub.f32 %v1390, %v1457
        %v1485 = vsub.f32 %v1395, %v1459
        %v1486 = vsub.f32 %v1400, %v1461
        %v1487 = vsub.f32 %v1405, %v1463
        %v1488 = vsub.f32 %v1410, %v1465
        %v1489 = vsub.f32 %v1415, %v1467
        %v1490 = vsub.f32 %v1420, %v1469
        %v1491 = vsub.f32 %v1425, %v1471
        %v1492 = vsub.f32 %v1430, %v1473
        %v1493 = vsub.f32 %v1435, %v1475
        %v1494 = vsub.f32 %v1440, %v1477
        %v1495 = vsub.f32 %v1445, %v1479
        %v1496 = vmul.f32 %v1480, 1.442695
        %v1497 = vpow.pop %v1496
        %v1498 = vmul.f32 %v1481, 1.442695
        %v1499 = vpow.pop %v1498
        %v1500 = vmul.f32 %v1482, 1.442695
        %v1501 = vpow.pop %v1500
        %v1502 = vmul.f32 %v1483, 1.442695
        %v1503 = vpow.pop %v1502
        %v1504 = vmul.f32 %v1484, 1.442695
        %v1505 = vpow.pop %v1504
        %v1506 = vmul.f32 %v1485, 1.442695
        %v1507 = vpow.pop %v1506
        %v1508 = vmul.f32 %v1486, 1.442695
        %v1509 = vpow.pop %v1508
        %v1510 = vmul.f32 %v1487, 1.442695
        %v1511 = vpow.pop %v1510
        %v1512 = vmul.f32 %v1488, 1.442695
        %v1513 = vpow.pop %v1512
        %v1514 = vmul.f32 %v1489, 1.442695
        %v1515 = vpow.pop %v1514
        %v1516 = vmul.f32 %v1490, 1.442695
        %v1517 = vpow.pop %v1516
        %v1518 = vmul.f32 %v1491, 1.442695
        %v1519 = vpow.pop %v1518
        %v1520 = vmul.f32 %v1492, 1.442695
        %v1521 = vpow.pop %v1520
        %v1522 = vmul.f32 %v1493, 1.442695
        %v1523 = vpow.pop %v1522
        %v1524 = vmul.f32 %v1494, 1.442695
        %v1525 = vpow.pop %v1524
        %v1526 = vmul.f32 %v1495, 1.442695
        %v1527 = vpow.pop %v1526
        %1528 = vmatprep.subr.mxu0 0.0
        %1529 = vmatpush1.xpose.msra.mxu0 %v1497
        %1530 = vmatprep.subr.mxu0 0.0
        %1531 = vmatpush1.xpose.msra.mxu0 %v1499
        %1532 = vmatprep.subr.mxu0 0.0
        %1533 = vmatpush1.xpose.msra.mxu0 %v1501
        %1534 = vmatprep.subr.mxu0 0.0
        %1535 = vmatpush1.xpose.msra.mxu0 %v1503
        %1536 = vmatprep.subr.mxu0 0.0
        %1537 = vmatpush1.xpose.msra.mxu0 %v1505
        %1538 = vmatprep.subr.mxu0 0.0
        %1539 = vmatpush1.xpose.msra.mxu0 %v1507
        %1540 = vmatprep.subr.mxu0 0.0
        %1541 = vmatpush1.xpose.msra.mxu0 %v1509
        %1542 = vmatprep.subr.mxu0 0.0
        %1543 = vmatpush1.xpose.msra.mxu0 %v1511
        %1544 = vmatprep.subr.mxu0 0.0
        %1545 = vmatpush1.xpose.msra.mxu0 %v1513
        %1546 = vmatprep.subr.mxu0 0.0
        %1547 = vmatpush1.xpose.msra.mxu0 %v1515
        %1548 = vmatprep.subr.mxu0 0.0
        %1549 = vmatpush1.xpose.msra.mxu0 %v1517
        %1550 = vmatprep.subr.mxu0 0.0
        %1551 = vmatpush1.xpose.msra.mxu0 %v1519
        %1552 = vmatprep.subr.mxu0 0.0
        %1553 = vmatpush1.xpose.msra.mxu0 %v1521
        %1554 = vmatprep.subr.mxu0 0.0
        %1555 = vmatpush1.xpose.msra.mxu0 %v1523
        %1556 = vmatprep.subr.mxu0 0.0
        %1557 = vmatpush1.xpose.msra.mxu0 %v1525
        %1558 = vmatprep.subr.mxu0 0.0
        %1559 = vmatpush1.xpose.msra.mxu0 %v1527
        %1560 = vmatprep.subr.mxu0 0.0
        %1561 = vmatpush1.xpose.msra.mxu0 0.0
        %1562 = vmatprep.subr.mxu0 0.0
        %1563 = vmatpush1.xpose.msra.mxu0 0.0
        %1564 = vmatprep.subr.mxu0 0.0
        %1565 = vmatpush1.xpose.msra.mxu0 0.0
        %1566 = vmatprep.subr.mxu0 0.0
        %1567 = vmatpush1.xpose.msra.mxu0 0.0
        %1568 = vmatprep.subr.mxu0 0.0
        %1569 = vmatpush1.xpose.msra.mxu0 0.0
        %1570 = vmatprep.subr.mxu0 0.0
        %1571 = vmatpush1.xpose.msra.mxu0 0.0
        %1572 = vmatprep.subr.mxu0 0.0
        %1573 = vmatpush1.xpose.msra.mxu0 0.0
        %1574 = vmatprep.subr.mxu0 0.0
        %1575 = vmatpush1.xpose.msra.mxu0 0.0
        %1576 = vmatprep.subr.mxu0 0.0
        %1577 = vmatpush1.xpose.msra.mxu0 0.0
        %1578 = vmatprep.subr.mxu0 0.0
        %1579 = vmatpush1.xpose.msra.mxu0 0.0
        %1580 = vmatprep.subr.mxu0 0.0
        %1581 = vmatpush1.xpose.msra.mxu0 0.0
        %1582 = vmatprep.subr.mxu0 0.0
        %1583 = vmatpush1.xpose.msra.mxu0 0.0
        %1584 = vmatprep.subr.mxu0 0.0
        %1585 = vmatpush1.xpose.msra.mxu0 0.0
        %1586 = vmatprep.subr.mxu0 0.0
        %1587 = vmatpush1.xpose.msra.mxu0 0.0
        %1588 = vmatprep.subr.mxu0 0.0
        %1589 = vmatpush1.xpose.msra.mxu0 0.0
        %1590 = vmatprep.subr.mxu0 0.0
        %1591 = vmatpush1.xpose.msra.mxu0 0.0
        %1592 = vmatprep.mubr.f32.mxu0 0.0
        %1593 = vmatmul.mubr.f32.gmra.mrb[0].mxu0 %v1193
        %v1594 = vpop.f32.mrb[0].mxu0
        %v1595 = vadd.f32 0.0, %v1594
        %v1596 = vpop.f32.mrb[0].mxu0
        %1597 = vmatprep.mubr.f32.mxu0 0.0
        %1598 = vmatmul.mubr.f32.gmra.mrb[0].mxu0 %v1198
        %v1599 = vpop.f32.mrb[0].mxu0
        %v1600 = vadd.f32 0.0, %v1599
        %v1601 = vpop.f32.mrb[0].mxu0
        %1602 = vmatprep.mubr.f32.mxu0 0.0
        %1603 = vmatmul.mubr.f32.gmra.mrb[0].mxu0 %v1203
        %v1604 = vpop.f32.mrb[0].mxu0
        %v1605 = vadd.f32 0.0, %v1604
        %v1606 = vpop.f32.mrb[0].mxu0
        %1607 = vmatprep.mubr.f32.mxu0 0.0
        %1608 = vmatmul.mubr.f32.gmra.mrb[0].mxu0 %v1208
        %v1609 = vpop.f32.mrb[0].mxu0
        %v1610 = vadd.f32 0.0, %v1609
        %v1611 = vpop.f32.mrb[0].mxu0
        %1612 = vmatprep.mubr.f32.mxu0 0.0
        %1613 = vmatmul.mubr.f32.gmra.mrb[0].mxu0 %v1213
        %v1614 = vpop.f32.mrb[0].mxu0
        %v1615 = vadd.f32 0.0, %v1614
        %v1616 = vpop.f32.mrb[0].mxu0
        %1617 = vmatprep.mubr.f32.mxu0 0.0
        %1618 = vmatmul.mubr.f32.gmra.mrb[0].mxu0 %v1218
        %v1619 = vpop.f32.mrb[0].mxu0
        %v1620 = vadd.f32 0.0, %v1619
        %v1621 = vpop.f32.mrb[0].mxu0
        %1622 = vmatprep.mubr.f32.mxu0 0.0
        %1623 = vmatmul.mubr.f32.gmra.mrb[0].mxu0 %v1223
        %v1624 = vpop.f32.mrb[0].mxu0
        %v1625 = vadd.f32 0.0, %v1624
        %v1626 = vpop.f32.mrb[0].mxu0
        %1627 = vmatprep.mubr.f32.mxu0 0.0
        %1628 = vmatmul.mubr.f32.gmra.mrb[0].mxu0 %v1228
        %v1629 = vpop.f32.mrb[0].mxu0
        %v1630 = vadd.f32 0.0, %v1629
        %v1631 = vpop.f32.mrb[0].mxu0
        %1632 = vmatprep.mubr.f32.mxu0 0.0
        %1633 = vmatmul.mubr.f32.gmra.mrb[0].mxu0 %v1233
        %v1634 = vpop.f32.mrb[0].mxu0
        %v1635 = vadd.f32 0.0, %v1634
        %v1636 = vpop.f32.mrb[0].mxu0
        %1637 = vmatprep.mubr.f32.mxu0 0.0
        %1638 = vmatmul.mubr.f32.gmra.mrb[0].mxu0 %v1238
        %v1639 = vpop.f32.mrb[0].mxu0
        %v1640 = vadd.f32 0.0, %v1639
        %v1641 = vpop.f32.mrb[0].mxu0
        %1642 = vmatprep.mubr.f32.mxu0 0.0
        %1643 = vmatmul.mubr.f32.gmra.mrb[0].mxu0 %v1243
        %v1644 = vpop.f32.mrb[0].mxu0
        %v1645 = vadd.f32 0.0, %v1644
        %v1646 = vpop.f32.mrb[0].mxu0
        %1647 = vmatprep.mubr.f32.mxu0 0.0
        %1648 = vmatmul.mubr.f32.gmra.mrb[0].mxu0 %v1248
        %v1649 = vpop.f32.mrb[0].mxu0
        %v1650 = vadd.f32 0.0, %v1649
        %v1651 = vpop.f32.mrb[0].mxu0
        %1652 = vmatprep.mubr.f32.mxu0 0.0
        %1653 = vmatmul.mubr.f32.gmra.mrb[0].mxu0 %v1253
        %v1654 = vpop.f32.mrb[0].mxu0
        %v1655 = vadd.f32 0.0, %v1654
        %v1656 = vpop.f32.mrb[0].mxu0
        %1657 = vmatprep.mubr.f32.mxu0 0.0
        %1658 = vmatmul.mubr.f32.gmra.mrb[0].mxu0 %v1258
        %v1659 = vpop.f32.mrb[0].mxu0
        %v1660 = vadd.f32 0.0, %v1659
        %v1661 = vpop.f32.mrb[0].mxu0
        %1662 = vmatprep.mubr.f32.mxu0 0.0
        %1663 = vmatmul.mubr.f32.gmra.mrb[0].mxu0 %v1263
        %v1664 = vpop.f32.mrb[0].mxu0
        %v1665 = vadd.f32 0.0, %v1664
        %v1666 = vpop.f32.mrb[0].mxu0
        %1667 = vmatprep.mubr.f32.mxu0 0.0
        %1668 = vmatmul.mubr.f32.gmra.mrb[0].mxu0 %v1268
        %v1669 = vpop.f32.mrb[0].mxu0
        %v1670 = vadd.f32 0.0, %v1669
        %v1671 = vpop.f32.mrb[0].mxu0
        %1672 = vdwg.mxu0
        %1673 = vmatprep.subr.mxu0 0.0
        %1674 = vmatpush1.xpose.msra.mxu0 %v1497
        %1675 = vmatprep.subr.mxu0 0.0
        %1676 = vmatpush1.xpose.msra.mxu0 %v1499
        %1677 = vmatprep.subr.mxu0 0.0
        %1678 = vmatpush1.xpose.msra.mxu0 %v1501
        %1679 = vmatprep.subr.mxu0 0.0
        %1680 = vmatpush1.xpose.msra.mxu0 %v1503
        %1681 = vmatprep.subr.mxu0 0.0
        %1682 = vmatpush1.xpose.msra.mxu0 %v1505
        %1683 = vmatprep.subr.mxu0 0.0
        %1684 = vmatpush1.xpose.msra.mxu0 %v1507
        %1685 = vmatprep.subr.mxu0 0.0
        %1686 = vmatpush1.xpose.msra.mxu0 %v1509
        %1687 = vmatprep.subr.mxu0 0.0
        %1688 = vmatpush1.xpose.msra.mxu0 %v1511
        %1689 = vmatprep.subr.mxu0 0.0
        %1690 = vmatpush1.xpose.msra.mxu0 %v1513
        %1691 = vmatprep.subr.mxu0 0.0
        %1692 = vmatpush1.xpose.msra.mxu0 %v1515
        %1693 = vmatprep.subr.mxu0 0.0
        %1694 = vmatpush1.xpose.msra.mxu0 %v1517
        %1695 = vmatprep.subr.mxu0 0.0
        %1696 = vmatpush1.xpose.msra.mxu0 %v1519
        %1697 = vmatprep.subr.mxu0 0.0
        %1698 = vmatpush1.xpose.msra.mxu0 %v1521
        %1699 = vmatprep.subr.mxu0 0.0
        %1700 = vmatpush1.xpose.msra.mxu0 %v1523
        %1701 = vmatprep.subr.mxu0 0.0
        %1702 = vmatpush1.xpose.msra.mxu0 %v1525
        %1703 = vmatprep.subr.mxu0 0.0
        %1704 = vmatpush1.xpose.msra.mxu0 %v1527
        %1705 = vmatprep.subr.mxu0 0.0
        %1706 = vmatpush1.xpose.msra.mxu0 0.0
        %1707 = vmatprep.subr.mxu0 0.0
        %1708 = vmatpush1.xpose.msra.mxu0 0.0
        %1709 = vmatprep.subr.mxu0 0.0
        %1710 = vmatpush1.xpose.msra.mxu0 0.0
        %1711 = vmatprep.subr.mxu0 0.0
        %1712 = vmatpush1.xpose.msra.mxu0 0.0
        %1713 = vmatprep.subr.mxu0 0.0
        %1714 = vmatpush1.xpose.msra.mxu0 0.0
        %1715 = vmatprep.subr.mxu0 0.0
        %1716 = vmatpush1.xpose.msra.mxu0 0.0
        %1717 = vmatprep.subr.mxu0 0.0
        %1718 = vmatpush1.xpose.msra.mxu0 0.0
        %1719 = vmatprep.subr.mxu0 0.0
        %1720 = vmatpush1.xpose.msra.mxu0 0.0
        %1721 = vmatprep.subr.mxu0 0.0
        %1722 = vmatpush1.xpose.msra.mxu0 0.0
        %1723 = vmatprep.subr.mxu0 0.0
        %1724 = vmatpush1.xpose.msra.mxu0 0.0
        %1725 = vmatprep.subr.mxu0 0.0
        %1726 = vmatpush1.xpose.msra.mxu0 0.0
        %1727 = vmatprep.subr.mxu0 0.0
        %1728 = vmatpush1.xpose.msra.mxu0 0.0
        %1729 = vmatprep.subr.mxu0 0.0
        %1730 = vmatpush1.xpose.msra.mxu0 0.0
        %1731 = vmatprep.subr.mxu0 0.0
        %1732 = vmatpush1.xpose.msra.mxu0 0.0
        %1733 = vmatprep.subr.mxu0 0.0
        %1734 = vmatpush1.xpose.msra.mxu0 0.0
        %1735 = vmatprep.subr.mxu0 0.0
        %1736 = vmatpush1.xpose.msra.mxu0 0.0
        %1737 = vmatprep.mubr.f32.mxu0 0.0
        %1738 = vmatmul.mubr.f32.gmra.mrb[0].mxu0 1.0
        %v1739 = vpop.f32.mrb[0].mxu0
        %v1740 = vadd.f32 0.0, %v1739
        %v1741 = vpop.f32.mrb[0].mxu0
        %1742 = vdwg.mxu0
        %v1743 = vld [vmem:[%s7] sm:$0xf]
        %1744 = vmatprep.subr.mxu0 0.0
        %1745 = vmatpush1.msra.mxu0 %v1595
        %1746 = vmatprep.subr.mxu0 0.0
        %1747 = vmatpush1.msra.mxu0 %v1600
        %1748 = vmatprep.subr.mxu0 0.0
        %1749 = vmatpush1.msra.mxu0 %v1605
        %1750 = vmatprep.subr.mxu0 0.0
        %1751 = vmatpush1.msra.mxu0 %v1610
        %1752 = vmatprep.subr.mxu0 0.0
        %1753 = vmatpush1.msra.mxu0 %v1615
        %1754 = vmatprep.subr.mxu0 0.0
        %1755 = vmatpush1.msra.mxu0 %v1620
        %1756 = vmatprep.subr.mxu0 0.0
        %1757 = vmatpush1.msra.mxu0 %v1625
        %1758 = vmatprep.subr.mxu0 0.0
        %1759 = vmatpush1.msra.mxu0 %v1630
        %1760 = vmatprep.subr.mxu0 0.0
        %1761 = vmatpush1.msra.mxu0 %v1635
        %1762 = vmatprep.subr.mxu0 0.0
        %1763 = vmatpush1.msra.mxu0 %v1640
        %1764 = vmatprep.subr.mxu0 0.0
        %1765 = vmatpush1.msra.mxu0 %v1645
        %1766 = vmatprep.subr.mxu0 0.0
        %1767 = vmatpush1.msra.mxu0 %v1650
        %1768 = vmatprep.subr.mxu0 0.0
        %1769 = vmatpush1.msra.mxu0 %v1655
        %1770 = vmatprep.subr.mxu0 0.0
        %1771 = vmatpush1.msra.mxu0 %v1660
        %1772 = vmatprep.subr.mxu0 0.0
        %1773 = vmatpush1.msra.mxu0 %v1665
        %1774 = vmatprep.subr.mxu0 0.0
        %1775 = vmatpush1.msra.mxu0 %v1670
        %1776 = vmatprep.subr.mxu0 0.0
        %1777 = vmatpush1.msra.mxu0 0.0
        %1778 = vmatprep.subr.mxu0 0.0
        %1779 = vmatpush1.msra.mxu0 0.0
        %1780 = vmatprep.subr.mxu0 0.0
        %1781 = vmatpush1.msra.mxu0 0.0
        %1782 = vmatprep.subr.mxu0 0.0
        %1783 = vmatpush1.msra.mxu0 0.0
        %1784 = vmatprep.subr.mxu0 0.0
        %1785 = vmatpush1.msra.mxu0 0.0
        %1786 = vmatprep.subr.mxu0 0.0
        %1787 = vmatpush1.msra.mxu0 0.0
        %1788 = vmatprep.subr.mxu0 0.0
        %1789 = vmatpush1.msra.mxu0 0.0
        %1790 = vmatprep.subr.mxu0 0.0
        %1791 = vmatpush1.msra.mxu0 0.0
        %1792 = vmatprep.subr.mxu0 0.0
        %1793 = vmatpush1.msra.mxu0 0.0
        %1794 = vmatprep.subr.mxu0 0.0
        %1795 = vmatpush1.msra.mxu0 0.0
        %1796 = vmatprep.subr.mxu0 0.0
        %1797 = vmatpush1.msra.mxu0 0.0
        %1798 = vmatprep.subr.mxu0 0.0
        %1799 = vmatpush1.msra.mxu0 0.0
        %1800 = vmatprep.subr.mxu0 0.0
        %1801 = vmatpush1.msra.mxu0 0.0
        %1802 = vmatprep.subr.mxu0 0.0
        %1803 = vmatpush1.msra.mxu0 0.0
        %1804 = vmatprep.subr.mxu0 0.0
        %1805 = vmatpush1.msra.mxu0 0.0
        %1806 = vmatprep.subr.mxu0 0.0
        %1807 = vmatpush1.msra.mxu0 0.0
        %1808 = vmatprep.mubr.f32.mxu0 0.0
        %1809 = vmatmul.mubr.f32.gmra.mrb[0].mxu0 %v1743
        %v1810 = vpop.f32.mrb[0].mxu0
        %v1811 = vadd.f32 0.0, %v1810
        %v1812 = vpop.f32.mrb[0].mxu0
        %1813 = vdwg.mxu0
        %v1814 = vrcp.pop %v1740
        %v1815 = vlaneseq
        %v1816 = vshrl.u32 %v1815, 7
        %v1817 = vsub.s32 0, %v1816
        %v1818 = vrot.slane %v1814, %v1817
        %v1819 = vmul.f32 %v1811, %v1818
        %v1820 = vld [vmem:[%s8] sm:$0xf]
        %1822 = vset.pattern.permute.xlu0 0
        %1823 = vperm.xlu0 %1822, %v1820
        %v1824 = vpop.permute.xlu0 %1823
        %v1826 = vadd.f32 %v1819, %v1824
        %v1827 = vadd.f32 %v1826, %v347
        %1828 = vst [vmem:[%s337] sm:$0xf] %v1827
        %s1829 = sand.u32 %s239, 1
        %s1830 = scalar_lea.sflag [#allocation3], %s1829
        %s1831 = sand.u32 %s239, 1
        %s1832 = smul.addr %s1831, 4
        %s1833 = scalar_lea.vmem [#allocation2], %s1832
        // Predicated region
        $region57: #{tpu_custom_call.1} parent=55 // pred_check
          %p1834 = pneg %p249
        $region58: #{tpu_custom_call.1} parent=55 // pred_check_branch
          %1836 = sbr.rel (%p1834) target = $region60
        $region59: #{tpu_custom_call.1} parent=55 // pred_region
          %s1838 = ssub.s32 64, 64
          %1839 = vsyncadd %s1830, %s1838
          %s1840 = sadd.s32 %s28, %s27
          %s1841 = smul.addr %s1840, 64
          %s1842 = scalar_lea.hbm %s9, %s1841
          %s1844 = sshll.u32 %s1833, 4
          %s1845 = int_to_ptr.vmem [resolvable:$true] %s1844
          %1847 = dma.vmem_to_hbm [thread:$0]  %s1845, 64, %s1842, %s1830
        $region60: #{tpu_custom_call.1} parent=55 // pred_fallthru
          _
      $region56: #{tpu_custom_call.1} parent=5 // pred_fallthru
        _
      %p1848 = scmp.le.s32.totalorder 2, %s18
      // Predicated region
      $region61: #{tpu_custom_call.1} parent=5 // pred_check
        %p1849 = pneg %p1848
      $region62: #{tpu_custom_call.1} parent=5 // pred_check_branch
        %1851 = sbr.rel (%p1849) target = $region64
      $region63: #{tpu_custom_call.1} parent=5 // pred_region
        %s1852 = ssub.s32 %s18, 2
        // Predicated region
        $region65: #{tpu_custom_call.1} parent=63 // pred_check
          %p1853 = pneg %p255
        $region66: #{tpu_custom_call.1} parent=63 // pred_check_branch
          %1855 = sbr.rel (%p1853) target = $region68
        $region67: #{tpu_custom_call.1} parent=63 // pred_region
          %s1856 = sand.u32 %s240, 1
          %s1857 = scalar_lea.sflag [#allocation3], %s1856
          %s1858 = sand.u32 %s240, 1
          %s1859 = smul.addr %s1858, 4
          %s1860 = scalar_lea.vmem [#allocation2], %s1859
          %1861 = dma.done %s1857, 64
        $region68: #{tpu_custom_call.1} parent=63 // pred_fallthru
          _
      $region64: #{tpu_custom_call.1} parent=5 // pred_fallthru
        _
    $region6: #{tpu_custom_call.1} parent=1 // loop_footer
      %s22 = sadd.s32 1, %s18
    $region7: #{tpu_custom_call.1} parent=1 // loop_footer_branch
      %17 = sbr.rel target = $region3
    $region8: #{tpu_custom_call.1} parent=1 // loop_exit
      _
    %1862 = vsyncpa [#allocation3], 1
    %s1863 = scalar_lea.sflag [#allocation3], 1
    %1864 = vsyncpa %s1863, 1

</llo_original>
